<compile_context>
chip_gen: v6e
topology: v6e:2x2x1
jax: 0.10.0
libtpu: 0.0.40
codegen_flags: <defaults>
</compile_context>

<pallas_src>
import math

import jax
import jax.numpy as jnp
from jax.experimental import pallas as pl
from jax.experimental.pallas import tpu as pltpu


def _round_up(x, m):
    return ((x + m - 1) // m) * m


def _tpu_vmem_bytes():
    try:
        return int(pltpu.get_tpu_info().vmem_capacity_bytes)
    except Exception:
        return 64 << 20  # conservative (v7x per-TensorCore VMEM)


_VMEM_BYTES = _tpu_vmem_bytes()
_BIG_VMEM = _VMEM_BYTES >= (96 << 20)          # v5e / v6e (128 MiB VMEM)
_TK_MAX_DEFAULT = 1024 if _BIG_VMEM else 512   # tighter cap on v7x (64 MiB)
_VMEM_LIMIT = min(64 << 20, _VMEM_BYTES // 2)  # never above half of physical
_SMALL_PROBLEM_FLOPS = 1 << 22                 # below this, pallas is pure overhead


def _mm_add_kernel_accum_out(x1_ref, x2_ref, inp_ref, o_ref):
    """f32 output: accumulate directly into the resident output block."""
    k = pl.program_id(2)

    @pl.when(k == 0)
    def _():
        o_ref[...] = jnp.zeros_like(o_ref)

    o_ref[...] += jnp.dot(
        x1_ref[...], x2_ref[...], preferred_element_type=jnp.float32
    )

    @pl.when(k == pl.num_programs(2) - 1)
    def _():
        o_ref[...] += inp_ref[...].astype(jnp.float32)


def _mm_add_kernel_scratch_acc(x1_ref, x2_ref, inp_ref, o_ref, acc_ref):
    """Non-f32 output: f32 VMEM accumulator, single cast on the final store."""
    k = pl.program_id(2)

    @pl.when(k == 0)
    def _():
        acc_ref[...] = jnp.zeros_like(acc_ref)

    acc_ref[...] += jnp.dot(
        x1_ref[...], x2_ref[...], preferred_element_type=jnp.float32
    )

    @pl.when(k == pl.num_programs(2) - 1)
    def _():
        o_ref[...] = (acc_ref[...] + inp_ref[...].astype(jnp.float32)).astype(
            o_ref.dtype
        )


def _normalize_inp(inp, M, N):
    """Collapse leading size-1 dims; return a 2-D array broadcastable to (M, N)."""
    inp = jnp.asarray(inp)
    if inp.ndim == 0:
        inp = inp.reshape(1, 1)
    elif inp.ndim == 1:
        inp = inp.reshape(1, inp.shape[0])
    elif inp.ndim > 2:
        lead = math.prod(inp.shape[:-2])
        assert lead == 1, "inp must be broadcastable to the (M, N) mm result"
        inp = inp.reshape(inp.shape[-2], inp.shape[-1])
    r, c = inp.shape
    assert r in (1, M) and c in (1, N), "inp must be broadcastable to (M, N)"
    return inp


def mm_add(x1, x2, inp, *, tm_max=256, tn_max=512, tk_max=None):
    """out = x1 @ x2 + inp, with inp broadcastable to the (M, N) mm result."""
    M, K = x1.shape
    K2, N = x2.shape
    assert K == K2, "inner dims must match for mm"

    out_dtype = jnp.result_type(x1.dtype, x2.dtype, inp.dtype)
    inp2 = _normalize_inp(inp, M, N)

    # Small-problem bypass: a single fused XLA dot beats pallas launch/pipeline
    # overhead for tiny problems (e.g. the module's shipped shapes).
    if 2 * M * N * K < _SMALL_PROBLEM_FLOPS:
        res = jnp.dot(x1, x2, preferred_element_type=jnp.float32)
        return (res + inp2.astype(jnp.float32)).astype(out_dtype)

    if tk_max is None:
        tk_max = _TK_MAX_DEFAULT

    # (8, 128)-aligned tile sizes; no M/N padding (edge blocks handle tails).
    tm = min(_round_up(M, 8), tm_max)
    tn = min(_round_up(N, 128), tn_max)
    if K <= tk_max:
        tk, Kp = K, K            # full-dim K block: exact, no padding needed
    else:
        tk = tk_max              # multiple of 128
        Kp = _round_up(K, tk)
        if Kp != K:              # zero-pad ONLY the reduction axis (exactness)
            x1 = jnp.pad(x1, ((0, 0), (0, Kp - K)))
            x2 = jnp.pad(x2, ((0, Kp - K), (0, 0)))

    grid = (pl.cdiv(M, tm), pl.cdiv(N, tn), Kp // tk)

    # inp tiled only along axes it actually spans (no wrapper broadcast_to).
    row_tiled = inp2.shape[0] == M
    col_tiled = inp2.shape[1] == N
    if row_tiled and col_tiled:
        inp_spec = pl.BlockSpec((tm, tn), lambda i, j, k: (i, j))
    elif col_tiled:
        inp_spec = pl.BlockSpec((1, tn), lambda i, j, k: (0, j))
    elif row_tiled:
        inp_spec = pl.BlockSpec((tm, 1), lambda i, j, k: (i, 0))
    else:
        inp_spec = pl.BlockSpec((1, 1), lambda i, j, k: (0, 0))

    if out_dtype == jnp.float32:
        kernel = _mm_add_kernel_accum_out
        scratch = []
    else:
        kernel = _mm_add_kernel_scratch_acc
        scratch = [pltpu.VMEM((tm, tn), jnp.float32)]

    cost = pl.CostEstimate(
        flops=2 * M * N * K,
        transcendentals=0,
        bytes_accessed=(
            M * K * x1.dtype.itemsize
            + K * N * x2.dtype.itemsize
            + inp2.size * inp2.dtype.itemsize
            + M * N * out_dtype.itemsize
        ),
    )

    out = pl.pallas_call(
        kernel,
        out_shape=jax.ShapeDtypeStruct((M, N), out_dtype),
        grid_spec=pltpu.PrefetchScalarGridSpec(
            num_scalar_prefetch=0,
            grid=grid,
            in_specs=[
                pl.BlockSpec((tm, tk), lambda i, j, k: (i, k)),
                pl.BlockSpec((tk, tn), lambda i, j, k: (k, j)),
                inp_spec,  # no K dependence: fetched once per (i, j) tile
            ],
            out_specs=pl.BlockSpec((tm, tn), lambda i, j, k: (i, j)),
            scratch_shapes=scratch,
        ),
        compiler_params=pltpu.CompilerParams(
            # M/N parallel (sharded across the 2 TCs on v7x), K arbitrary.
            dimension_semantics=("parallel", "parallel", "arbitrary"),
            vmem_limit_bytes=_VMEM_LIMIT,
        ),
        cost_estimate=cost,
    )(x1, x2, inp2)
    return out


def _check(out, ref, tol):
    err = float(jnp.max(jnp.abs(out - ref)))
    scale = float(jnp.maximum(1.0, jnp.max(jnp.abs(ref))))
    assert out.shape == ref.shape, "shape mismatch vs reference"
    assert err <= tol * scale, f"max err {err} > {tol} * {scale}"


if __name__ == "__main__":
    key = jax.random.PRNGKey(0)
    ks = jax.random.split(key, 9)

    # Case 1: tiny module-implied shapes -> small-problem bypass (fused XLA dot).
    x1_s = jax.random.normal(ks[0], (8, 32), jnp.float32)
    x2_s = jax.random.normal(ks[1], (32, 16), jnp.float32)
    inp_s = jax.random.normal(ks[2], (8, 16), jnp.float32)
    out_s = mm_add(x1_s, x2_s, inp_s)
    jax.block_until_ready(out_s)
    ref_s = jnp.dot(x1_s, x2_s, preferred_element_type=jnp.float32) + inp_s
    _check(out_s, ref_s, 1e-5)

    # Case 2: Pallas path.  Multi-step K reduction, 2 tiles along M (feeds both
    # v7x TensorCores), row-bias inp (1, N) -> no broadcast materialized in HBM.
    M, K, N = 512, 2048, 384
    x1_l = jax.random.normal(ks[3], (M, K), jnp.float32)
    x2_l = jax.random.normal(ks[4], (K, N), jnp.float32)
    inp_l = jax.random.normal(ks[5], (1, N), jnp.float32)
    out_l = mm_add(x1_l, x2_l, inp_l)
    jax.block_until_ready(out_l)
    ref_l = jnp.dot(x1_l, x2_l, preferred_element_type=jnp.float32) + inp_l
    _check(out_l, ref_l, 1e-2)

    # Case 3: Pallas path with ragged (non tile-multiple) M/N edges and a full
    # (M, N) inp -- exercises partial edge blocks without any M/N padding.
    M, K, N = 384, 640, 272
    x1_r = jax.random.normal(ks[6], (M, K), jnp.float32)
    x2_r = jax.random.normal(ks[7], (K, N), jnp.float32)
    inp_r = jax.random.normal(ks[8], (M, N), jnp.float32)
    out_r = mm_add(x1_r, x2_r, inp_r)
    jax.block_until_ready(out_r)
    ref_r = jnp.dot(x1_r, x2_r, preferred_element_type=jnp.float32) + inp_r
    _check(out_r, ref_r, 1e-2)

    print("KERNEL_OK")
</pallas_src>

<mosaic_0001>
module attributes {stable_mosaic.version = 11 : i64} {
  func.func @_mm_add_kernel_accum_out(%arg0: i32, %arg1: i32, %arg2: i32, %arg3: memref<256x512xf32, #tpu.memory_space<vmem>>, %arg4: memref<512x384xf32, #tpu.memory_space<vmem>>, %arg5: memref<1x384xf32, #tpu.memory_space<vmem>>, %arg6: memref<256x384xf32, #tpu.memory_space<vmem>>) attributes {dimension_semantics = [#tpu.dimension_semantics<parallel>, #tpu.dimension_semantics<parallel>, #tpu.dimension_semantics<arbitrary>], iteration_bounds = array<i64: 2, 1, 4>, scalar_prefetch = 0 : i64, scratch_operands = 0 : i64, tpu.core_type = #tpu.core_type<tc>, window_params = [{transform_indices = @transform_0, window_bounds = array<i64: 256, 512>}, {transform_indices = @transform_1, window_bounds = array<i64: 512, 384>}, {transform_indices = @transform_2, window_bounds = array<i64: 1, 384>}, {transform_indices = @transform_3, window_bounds = array<i64: 256, 384>}]} {
    %c0_i32 = arith.constant 0 : i32
    %0 = arith.cmpi eq, %arg2, %c0_i32 : i32
    %1 = arith.extui %0 : i1 to i32
    %c0_i32_0 = arith.constant 0 : i32
    %2 = arith.cmpi ne, %1, %c0_i32_0 : i32
    scf.if %2 {
      %cst_9 = arith.constant 0.000000e+00 : f32
      %12 = vector.broadcast %cst_9 : f32 to vector<256x384xf32>
      %c0_10 = arith.constant 0 : index
      %c0_11 = arith.constant 0 : index
      %13 = vector.load %arg6[%c0_10, %c0_11] : memref<256x384xf32, #tpu.memory_space<vmem>>, vector<256x384xf32>
      tpu.vector_store %arg6[%c0_10, %c0_11], %12 {strides = array<i32>} : memref<256x384xf32, #tpu.memory_space<vmem>>, vector<256x384xf32>,
    } else {
    }
    %c0 = arith.constant 0 : index
    %c0_1 = arith.constant 0 : index
    %3 = vector.load %arg6[%c0, %c0_1] : memref<256x384xf32, #tpu.memory_space<vmem>>, vector<256x384xf32>
    %c0_2 = arith.constant 0 : index
    %c0_3 = arith.constant 0 : index
    %4 = vector.load %arg3[%c0_2, %c0_3] : memref<256x512xf32, #tpu.memory_space<vmem>>, vector<256x512xf32>
    %c0_4 = arith.constant 0 : index
    %c0_5 = arith.constant 0 : index
    %5 = vector.load %arg4[%c0_4, %c0_5] : memref<512x384xf32, #tpu.memory_space<vmem>>, vector<512x384xf32>
    %cst = arith.constant dense<0.000000e+00> : vector<256x384xf32>
    %6 = tpu.matmul %4, %5, %cst {dimension_numbers = #tpu.dot_dimension_numbers<[1], [0], [0], [1], [0, 0, 1, 1], [], []>} : vector<256x512xf32>, vector<512x384xf32>, vector<256x384xf32> -> vector<256x384xf32>
    %7 = arith.addf %3, %6 : vector<256x384xf32>
    %c0_6 = arith.constant 0 : index
    %c0_7 = arith.constant 0 : index
    %8 = vector.load %arg6[%c0_6, %c0_7] : memref<256x384xf32, #tpu.memory_space<vmem>>, vector<256x384xf32>
    tpu.vector_store %arg6[%c0_6, %c0_7], %7 {strides = array<i32>} : memref<256x384xf32, #tpu.memory_space<vmem>>, vector<256x384xf32>,
    %c3_i32 = arith.constant 3 : i32
    %9 = arith.cmpi eq, %arg2, %c3_i32 : i32
    %10 = arith.extui %9 : i1 to i32
    %c0_i32_8 = arith.constant 0 : i32
    %11 = arith.cmpi ne, %10, %c0_i32_8 : i32
    scf.if %11 {
      %c0_9 = arith.constant 0 : index
      %c0_10 = arith.constant 0 : index
      %12 = vector.load %arg6[%c0_9, %c0_10] : memref<256x384xf32, #tpu.memory_space<vmem>>, vector<256x384xf32>
      %c0_11 = arith.constant 0 : index
      %c0_12 = arith.constant 0 : index
      %13 = vector.load %arg5[%c0_11, %c0_12] : memref<1x384xf32, #tpu.memory_space<vmem>>, vector<1x384xf32>
      %14 = vector.broadcast %13 : vector<1x384xf32> to vector<256x384xf32>
      %15 = arith.addf %12, %14 : vector<256x384xf32>
      %c0_13 = arith.constant 0 : index
      %c0_14 = arith.constant 0 : index
      %16 = vector.load %arg6[%c0_13, %c0_14] : memref<256x384xf32, #tpu.memory_space<vmem>>, vector<256x384xf32>
      tpu.vector_store %arg6[%c0_13, %c0_14], %15 {strides = array<i32>} : memref<256x384xf32, #tpu.memory_space<vmem>>, vector<256x384xf32>,
    } else {
    }
    return
  }
  func.func @transform_0(%arg0: i32, %arg1: i32, %arg2: i32) -> (i32, i32) {
    %c0_i32 = arith.constant 0 : i32
    return %arg0, %arg2 : i32, i32
  }
  func.func @transform_1(%arg0: i32, %arg1: i32, %arg2: i32) -> (i32, i32) {
    %c0_i32 = arith.constant 0 : i32
    return %arg2, %arg1 : i32, i32
  }
  func.func @transform_2(%arg0: i32, %arg1: i32, %arg2: i32) -> (i32, i32) {
    %c0_i32 = arith.constant 0 : i32
    %c0_i32_0 = arith.constant 0 : i32
    return %c0_i32, %arg1 : i32, i32
  }
  func.func @transform_3(%arg0: i32, %arg1: i32, %arg2: i32) -> (i32, i32) {
    %c0_i32 = arith.constant 0 : i32
    return %arg0, %arg1 : i32, i32
  }
}

</mosaic_0001>

<llo_original>
// kernel: tpu_custom_call.1
$region0: #{tpu_custom_call.1}
  #allocation0 [shape = 'u32[]', space=smem, size = 0x4, offset = 0x4, fixed_abs, tag = 'smem constant byte address 0x4 - core index']
  #allocation1 [shape = 'u32[144,128]{1,0:T(1,128)}', space=vmem, size = 0x12000, scoped, tag = 'internal scratch']
  %s0 = inlined_call_operand.hbm [shape: f32[512,2048], index: 0, kind: input, shape index: {}]
  %s1 = inlined_call_operand.hbm [shape: f32[2048,384], index: 1, kind: input, shape index: {}]
  %s2 = inlined_call_operand.hbm [shape: f32[1,384], index: 2, kind: input, shape index: {}]
  %s3 = inlined_call_operand.hbm [shape: f32[512,384], index: 3, kind: output, shape index: {}]
  %s4 = sld [smem:[#allocation0]]
  $region65: #{tpu_custom_call.1} parent=0
    _
  %s6 = ssub.s32 1, %s4
  %s7 = scalar_select 0, %s6, %s4
  $region1: #{tpu_custom_call.1} parent=0
    #allocation2 [shape = 'u8[1048576]{0}', space=vmem, size = 0x100000, scoped, tag = 'input window, operand 0']
    #allocation3 [shape = 's32[2]{0}', space=sflag, size = 0x8, scoped, tag = 'scoped memory for tpu_custom_call.1']
    #allocation4 [shape = 's32[2]{0}', space=sflag, size = 0x8, scoped, tag = 'scoped memory for tpu_custom_call.1']
    #allocation5 [shape = 'u8[1572864]{0}', space=vmem, size = 0x180000, scoped, tag = 'input window, operand 1']
    #allocation6 [shape = 's32[2]{0}', space=sflag, size = 0x8, scoped, tag = 'scoped memory for tpu_custom_call.1']
    #allocation7 [shape = 'u8[1536]{0}', space=vmem, size = 0x800, scoped, tag = 'input window, operand 2, single buffered']
    #allocation8 [shape = 'u8[786432]{0}', space=vmem, size = 0xc0000, scoped, tag = 'output window, operand 0']
    %8 = vsyncpa [#allocation3], 0
    %s9 = scalar_lea.sflag [#allocation3], 1
    %10 = vsyncpa %s9, 0
    %11 = vsyncpa [#allocation6], 0
    %s12 = scalar_lea.sflag [#allocation6], 1
    %13 = vsyncpa %s12, 0
    %14 = vsyncpa [#allocation4], 0
    %s15 = scalar_lea.sflag [#allocation4], 1
    %16 = vsyncpa %s15, 0
    loop: start=0, step=1, limit=10
    $region2: #{tpu_custom_call.1} parent=1 // loop_pre_header
      _
    $region3: #{tpu_custom_call.1} parent=1 // loop_header
      %s18 = sphi 0, %s22
      %p19 = scmp.ge.s32.totalorder %s18, 10
      %s25 = sphi 0, %s44
      %s26 = sphi 0, %s40
      %s27 = sphi 0, %s36
      %s28 = sphi 0, %s25
      %s29 = sphi 0, %s26
      %s30 = sphi 0, %s27
      %s31 = sphi 0, %s28
      %s32 = sphi 0, %s29
      %s33 = sphi 0, %s30
      %s49 = sphi 0, %s51
      %s52 = sphi 0, %s49
      %s53 = sphi 0, %s52
      %s69 = sphi 0, %s53
      %s77 = sphi 0, %s79
      %s80 = sphi 0, %s77
      %s81 = sphi 0, %s80
      %s97 = sphi 0, %s81
      %s103 = sphi 0, %s105
      %s106 = sphi 0, %s103
      %s107 = sphi 0, %s106
      %s123 = sphi 0, %s107
      %s131 = sphi 0, %s133
      %s134 = sphi 0, %s131
      %s135 = sphi 0, %s134
      %s151 = sphi 0, %s135
    $region4: #{tpu_custom_call.1} parent=1 // loop_header_branch
      %21 = sbr.rel (%p19) target = $region8
    $region5: #{tpu_custom_call.1} parent=1 // loop_body
      %s23 = ssub.s32 %s18, 1
      %s24 = ssub.s32 %s18, 2
      %s34 = sadd.s32 1, %s27
      %p35 = scmp.ge.s32.totalorder %s34, 4
      %s36 = scalar_select %p35, 0, %s34
      %s37 = sadd.s32 1, %s26
      %s38 = scalar_select %p35, %s37, %s26
      %p39 = scmp.ge.s32.totalorder %s38, 1
      %s40 = scalar_select %p39, 0, %s38
      %s41 = sadd.s32 1, %s25
      %s42 = scalar_select %p39, %s41, %s25
      %p43 = scmp.ge.s32.totalorder %s42, 2
      %s44 = scalar_select %p43, 0, %s42
      %s45 = ssub.s32 %s25, %s44
      %s46 = ssub.s32 %s27, %s36
      %s47 = sor.u32 %s45, %s46
      %p48 = scmp.eq.s32.totalorder %s47, 0
      %s50 = sadd.s32 %s49, 1
      %s51 = scalar_select %p48, %s49, %s50
      %p54 = pneg %p48
      %p55 = scmp.eq.s32.totalorder %s18, 7
      %p56 = por %p54, %p55
      %p57 = scmp.ne.s32.totalorder %s49, %s52
      %p58 = scmp.eq.s32.totalorder %s18, 0
      %p59 = por %p57, %p58
      %p60 = scmp.ne.s32.totalorder %s49, %s52
      %p61 = scmp.eq.s32.totalorder %s23, 7
      %p62 = por %p60, %p61
      %p63 = scmp.ne.s32.totalorder %s52, %s53
      %p64 = scmp.eq.s32.totalorder %s23, 0
      %p65 = por %p63, %p64
      %p66 = scmp.ne.s32.totalorder %s52, %s53
      %p67 = scmp.eq.s32.totalorder %s24, 7
      %p68 = por %p66, %p67
      %p70 = scmp.ne.s32.totalorder %s53, %s69
      %p71 = scmp.eq.s32.totalorder %s24, 0
      %p72 = por %p70, %p71
      %s73 = ssub.s32 %s27, %s36
      %s74 = ssub.s32 %s26, %s40
      %s75 = sor.u32 %s73, %s74
      %p76 = scmp.eq.s32.totalorder %s75, 0
      %s78 = sadd.s32 %s77, 1
      %s79 = scalar_select %p76, %s77, %s78
      %p82 = pneg %p76
      %p83 = scmp.eq.s32.totalorder %s18, 7
      %p84 = por %p82, %p83
      %p85 = scmp.ne.s32.totalorder %s77, %s80
      %p86 = scmp.eq.s32.totalorder %s18, 0
      %p87 = por %p85, %p86
      %p88 = scmp.ne.s32.totalorder %s77, %s80
      %p89 = scmp.eq.s32.totalorder %s23, 7
      %p90 = por %p88, %p89
      %p91 = scmp.ne.s32.totalorder %s80, %s81
      %p92 = scmp.eq.s32.totalorder %s23, 0
      %p93 = por %p91, %p92
      %p94 = scmp.ne.s32.totalorder %s80, %s81
      %p95 = scmp.eq.s32.totalorder %s24, 7
      %p96 = por %p94, %p95
      %p98 = scmp.ne.s32.totalorder %s81, %s97
      %p99 = scmp.eq.s32.totalorder %s24, 0
      %p100 = por %p98, %p99
      %s101 = ssub.s32 %s26, %s40
      %p102 = scmp.eq.s32.totalorder %s101, 0
      %s104 = sadd.s32 %s103, 1
      %s105 = scalar_select %p102, %s103, %s104
      %p108 = pneg %p102
      %p109 = scmp.eq.s32.totalorder %s18, 7
      %p110 = por %p108, %p109
      %p111 = scmp.ne.s32.totalorder %s103, %s106
      %p112 = scmp.eq.s32.totalorder %s18, 0
      %p113 = por %p111, %p112
      %p114 = scmp.ne.s32.totalorder %s103, %s106
      %p115 = scmp.eq.s32.totalorder %s23, 7
      %p116 = por %p114, %p115
      %p117 = scmp.ne.s32.totalorder %s106, %s107
      %p118 = scmp.eq.s32.totalorder %s23, 0
      %p119 = por %p117, %p118
      %p120 = scmp.ne.s32.totalorder %s106, %s107
      %p121 = scmp.eq.s32.totalorder %s24, 7
      %p122 = por %p120, %p121
      %p124 = scmp.ne.s32.totalorder %s107, %s123
      %p125 = scmp.eq.s32.totalorder %s24, 0
      %p126 = por %p124, %p125
      %s127 = ssub.s32 %s25, %s44
      %s128 = ssub.s32 %s26, %s40
      %s129 = sor.u32 %s127, %s128
      %p130 = scmp.eq.s32.totalorder %s129, 0
      %s132 = sadd.s32 %s131, 1
      %s133 = scalar_select %p130, %s131, %s132
      %p136 = pneg %p130
      %p137 = scmp.eq.s32.totalorder %s18, 7
      %p138 = por %p136, %p137
      %p139 = scmp.ne.s32.totalorder %s131, %s134
      %p140 = scmp.eq.s32.totalorder %s18, 0
      %p141 = por %p139, %p140
      %p142 = scmp.ne.s32.totalorder %s131, %s134
      %p143 = scmp.eq.s32.totalorder %s23, 7
      %p144 = por %p142, %p143
      %p145 = scmp.ne.s32.totalorder %s134, %s135
      %p146 = scmp.eq.s32.totalorder %s23, 0
      %p147 = por %p145, %p146
      %p148 = scmp.ne.s32.totalorder %s134, %s135
      %p149 = scmp.eq.s32.totalorder %s24, 7
      %p150 = por %p148, %p149
      %p152 = scmp.ne.s32.totalorder %s135, %s151
      %p153 = scmp.eq.s32.totalorder %s24, 0
      %p154 = por %p152, %p153
      %p155 = scmp.le.s32.totalorder 1, %s18
      %p156 = scmp.lt.s32.totalorder %s18, 9
      %p157 = pnand %p155, %p156
      %p158 = pneg %p157
      // Predicated region
      $region9: #{tpu_custom_call.1} parent=5 // pred_check
        _
      $region10: #{tpu_custom_call.1} parent=5 // pred_check_branch
        %160 = sbr.rel (%p157) target = $region12
      $region11: #{tpu_custom_call.1} parent=5 // pred_region
        %s161 = ssub.s32 %s18, 1
        // Predicated region
        $region13: #{tpu_custom_call.1} parent=11 // pred_check
          %p162 = pneg %p119
        $region14: #{tpu_custom_call.1} parent=11 // pred_check_branch
          %164 = sbr.rel (%p162) target = $region16
        $region15: #{tpu_custom_call.1} parent=11 // pred_region
          %s165 = smul.u32 3, %s29
          %s167 = ssub.s32 48, 48
          %168 = vsyncadd [#allocation6], %s167
          %s169 = smul.addr %s165, 16
          %s170 = scalar_lea.hbm %s2, %s169
          %s172 = sshll.u32 [#allocation7], 4
          %s173 = int_to_ptr.vmem [resolvable:$true] %s172
          %175 = dma.hbm_to_vmem [thread:$0]  %s170, 48, %s173, [#allocation6]
        $region16: #{tpu_custom_call.1} parent=11 // pred_fallthru
          _
      $region12: #{tpu_custom_call.1} parent=5 // pred_fallthru
        _
      %p176 = scmp.lt.s32.totalorder %s18, 8
      // Predicated region
      $region17: #{tpu_custom_call.1} parent=5 // pred_check
        %p177 = pneg %p176
      $region18: #{tpu_custom_call.1} parent=5 // pred_check_branch
        %179 = sbr.rel (%p177) target = $region20
      $region19: #{tpu_custom_call.1} parent=5 // pred_region
        // Predicated region
        $region21: #{tpu_custom_call.1} parent=19 // pred_check
          %p180 = pneg %p59
        $region22: #{tpu_custom_call.1} parent=19 // pred_check_branch
          %182 = sbr.rel (%p180) target = $region24
        $region23: #{tpu_custom_call.1} parent=19 // pred_region
          %s183 = sand.u32 %s49, 1
          %s184 = scalar_lea.sflag [#allocation3], %s183
          %s185 = sand.u32 %s49, 1
          %s186 = smul.addr %s185, 1024
          %s187 = scalar_lea.vmem [#allocation2], %s186
          %s188 = smul.u32 32, %s25
          %s189 = smul.u32 4, %s27
          %s191 = ssub.s32 16384, 16384
          %192 = vsyncadd %s184, %s191
          %s193 = smul.addr %s188, 16
          %s194 = sadd.s32 %s189, %s193
          %s195 = smul.addr %s194, 128
          %s196 = scalar_lea.hbm %s0, %s195
          %s197 = sshll.u32 %s187, 4
          %s198 = int_to_ptr.vmem [resolvable:$true] %s197
          %203 = dma.hbm_to_vmem [thread:$0]  %s196, 16384, %s198, %s184, 2048, 512, 32
        $region24: #{tpu_custom_call.1} parent=19 // pred_fallthru
          _
        // Predicated region
        $region25: #{tpu_custom_call.1} parent=19 // pred_check
          %p204 = pneg %p87
        $region26: #{tpu_custom_call.1} parent=19 // pred_check_branch
          %206 = sbr.rel (%p204) target = $region28
        $region27: #{tpu_custom_call.1} parent=19 // pred_region
          %s207 = sand.u32 %s18, 1
          %s208 = scalar_lea.sflag [#allocation6], %s207
          %s209 = sand.u32 %s77, 1
          %s210 = smul.addr %s209, 1536
          %s211 = scalar_lea.vmem [#allocation5], %s210
          %s212 = smul.u32 64, %s27
          %s213 = smul.u32 3, %s26
          %s215 = ssub.s32 24576, 24576
          %216 = vsyncadd %s208, %s215
          %s217 = smul.addr %s212, 3
          %s218 = sadd.s32 %s213, %s217
          %s219 = smul.addr %s218, 128
          %s220 = scalar_lea.hbm %s1, %s219
          %s221 = sshll.u32 %s211, 4
          %s222 = int_to_ptr.vmem [resolvable:$true] %s221
          %227 = dma.hbm_to_vmem [thread:$0]  %s220, 24576, %s222, %s208, 384, 384, 24
        $region28: #{tpu_custom_call.1} parent=19 // pred_fallthru
          _
      $region20: #{tpu_custom_call.1} parent=5 // pred_fallthru
        _
      %p228 = scmp.le.s32.totalorder 1, %s18
      %p229 = scmp.lt.s32.totalorder %s18, 9
      %p230 = pnand %p228, %p229
      %p231 = pneg %p230
      // Predicated region
      $region29: #{tpu_custom_call.1} parent=5 // pred_check
        _
      $region30: #{tpu_custom_call.1} parent=5 // pred_check_branch
        %233 = sbr.rel (%p230) target = $region32
      $region31: #{tpu_custom_call.1} parent=5 // pred_region
        %s234 = ssub.s32 %s18, 1
        %s235 = sand.u32 %s52, 1
        %s236 = scalar_lea.sflag [#allocation3], %s235
        %s237 = sand.u32 %s52, 1
        %s238 = smul.addr %s237, 1024
        %s239 = scalar_lea.vmem [#allocation2], %s238
        // Predicated region
        $region33: #{tpu_custom_call.1} parent=31 // pred_check
          %p240 = pneg %p65
        $region34: #{tpu_custom_call.1} parent=31 // pred_check_branch
          %242 = sbr.rel (%p240) target = $region36
        $region35: #{tpu_custom_call.1} parent=31 // pred_region
          %243 = dma.done %s236, 16384
        $region36: #{tpu_custom_call.1} parent=31 // pred_fallthru
          _
        %s244 = sand.u32 %s23, 1
        %s245 = scalar_lea.sflag [#allocation6], %s244
        %s246 = sand.u32 %s80, 1
        %s247 = smul.addr %s246, 1536
        %s248 = scalar_lea.vmem [#allocation5], %s247
        // Predicated region
        $region37: #{tpu_custom_call.1} parent=31 // pred_check
          %p249 = pneg %p93
        $region38: #{tpu_custom_call.1} parent=31 // pred_check_branch
          %251 = sbr.rel (%p249) target = $region40
        $region39: #{tpu_custom_call.1} parent=31 // pred_region
          %252 = dma.done %s245, 24576
        $region40: #{tpu_custom_call.1} parent=31 // pred_fallthru
          _
        // Predicated region
        $region41: #{tpu_custom_call.1} parent=31 // pred_check
          %p253 = pneg %p119
        $region42: #{tpu_custom_call.1} parent=31 // pred_check_branch
          %255 = sbr.rel (%p253) target = $region44
        $region43: #{tpu_custom_call.1} parent=31 // pred_region
          %256 = dma.done [#allocation6], 48
        $region44: #{tpu_custom_call.1} parent=31 // pred_fallthru
          _
        %s257 = sand.u32 %s52, 1
        %s258 = scalar_lea.sflag [#allocation3], %s257
        %s259 = sand.u32 %s52, 1
        %s260 = smul.addr %s259, 1024
        %s261 = scalar_lea.vmem [#allocation2], %s260
        %p262 = pneg %p65
        %p263 = pneg %p62
        %s264 = sand.u32 %s23, 1
        %s265 = scalar_lea.sflag [#allocation6], %s264
        %s266 = sand.u32 %s80, 1
        %s267 = smul.addr %s266, 1536
        %s268 = scalar_lea.vmem [#allocation5], %s267
        %p269 = pneg %p93
        %p270 = pneg %p90
        %p271 = pneg %p119
        %p272 = pneg %p116
        %p273 = pneg %p147
        %p274 = pneg %p144
        %s275 = sand.u32 %s134, 1
        %s276 = scalar_lea.sflag [#allocation4], %s275
        %s277 = sand.u32 %s134, 1
        %s278 = smul.addr %s277, 768
        %s279 = scalar_lea.vmem [#allocation8], %s278
        %s280 = smul.u32 32, %s28
        %s281 = smul.u32 4, %s30
        %s282 = smul.u32 64, %s30
        %s283 = smul.u32 3, %s29
        %s284 = smul.u32 3, %s29
        %s285 = smul.u32 32, %s28
        %s286 = smul.u32 3, %s29
        %p287 = scmp.eq.s32.totalorder %s30, 0
        // Predicated region
        $region45: #{tpu_custom_call.1} parent=31 // pred_check
          %p288 = pneg %p287
        $region46: #{tpu_custom_call.1} parent=31 // pred_check_branch
          %290 = sbr.rel (%p288) target = $region48
        $region47: #{tpu_custom_call.1} parent=31 // pred_region
          %291 = vst [vmem:[%s279] sm:$0xff] 0.0
          %292 = vst [vmem:[%s279 + $0x8] sm:$0xff] 0.0
          %293 = vst [vmem:[%s279 + $0x10] sm:$0xff] 0.0
          %294 = vst [vmem:[%s279 + $0x18] sm:$0xff] 0.0
          %295 = vst [vmem:[%s279 + $0x20] sm:$0xff] 0.0
          %296 = vst [vmem:[%s279 + $0x28] sm:$0xff] 0.0
          %297 = vst [vmem:[%s279 + $0x30] sm:$0xff] 0.0
          %298 = vst [vmem:[%s279 + $0x38] sm:$0xff] 0.0
          %299 = vst [vmem:[%s279 + $0x40] sm:$0xff] 0.0
          %300 = vst [vmem:[%s279 + $0x48] sm:$0xff] 0.0
          %301 = vst [vmem:[%s279 + $0x50] sm:$0xff] 0.0
          %302 = vst [vmem:[%s279 + $0x58] sm:$0xff] 0.0
          %303 = vst [vmem:[%s279 + $0x60] sm:$0xff] 0.0
          %304 = vst [vmem:[%s279 + $0x68] sm:$0xff] 0.0
          %305 = vst [vmem:[%s279 + $0x70] sm:$0xff] 0.0
          %306 = vst [vmem:[%s279 + $0x78] sm:$0xff] 0.0
          %307 = vst [vmem:[%s279 + $0x80] sm:$0xff] 0.0
          %308 = vst [vmem:[%s279 + $0x88] sm:$0xff] 0.0
          %309 = vst [vmem:[%s279 + $0x90] sm:$0xff] 0.0
          %310 = vst [vmem:[%s279 + $0x98] sm:$0xff] 0.0
          %311 = vst [vmem:[%s279 + $0xa0] sm:$0xff] 0.0
          %312 = vst [vmem:[%s279 + $0xa8] sm:$0xff] 0.0
          %313 = vst [vmem:[%s279 + $0xb0] sm:$0xff] 0.0
          %314 = vst [vmem:[%s279 + $0xb8] sm:$0xff] 0.0
          %315 = vst [vmem:[%s279 + $0xc0] sm:$0xff] 0.0
          %316 = vst [vmem:[%s279 + $0xc8] sm:$0xff] 0.0
          %317 = vst [vmem:[%s279 + $0xd0] sm:$0xff] 0.0
          %318 = vst [vmem:[%s279 + $0xd8] sm:$0xff] 0.0
          %319 = vst [vmem:[%s279 + $0xe0] sm:$0xff] 0.0
          %320 = vst [vmem:[%s279 + $0xe8] sm:$0xff] 0.0
          %321 = vst [vmem:[%s279 + $0xf0] sm:$0xff] 0.0
          %322 = vst [vmem:[%s279 + $0xf8] sm:$0xff] 0.0
          %323 = vst [vmem:[%s279 + $0x100] sm:$0xff] 0.0
          %324 = vst [vmem:[%s279 + $0x108] sm:$0xff] 0.0
          %325 = vst [vmem:[%s279 + $0x110] sm:$0xff] 0.0
          %326 = vst [vmem:[%s279 + $0x118] sm:$0xff] 0.0
          %327 = vst [vmem:[%s279 + $0x120] sm:$0xff] 0.0
          %328 = vst [vmem:[%s279 + $0x128] sm:$0xff] 0.0
          %329 = vst [vmem:[%s279 + $0x130] sm:$0xff] 0.0
          %330 = vst [vmem:[%s279 + $0x138] sm:$0xff] 0.0
          %331 = vst [vmem:[%s279 + $0x140] sm:$0xff] 0.0
          %332 = vst [vmem:[%s279 + $0x148] sm:$0xff] 0.0
          %333 = vst [vmem:[%s279 + $0x150] sm:$0xff] 0.0
          %334 = vst [vmem:[%s279 + $0x158] sm:$0xff] 0.0
          %335 = vst [vmem:[%s279 + $0x160] sm:$0xff] 0.0
          %336 = vst [vmem:[%s279 + $0x168] sm:$0xff] 0.0
          %337 = vst [vmem:[%s279 + $0x170] sm:$0xff] 0.0
          %338 = vst [vmem:[%s279 + $0x178] sm:$0xff] 0.0
          %339 = vst [vmem:[%s279 + $0x180] sm:$0xff] 0.0
          %340 = vst [vmem:[%s279 + $0x188] sm:$0xff] 0.0
          %341 = vst [vmem:[%s279 + $0x190] sm:$0xff] 0.0
          %342 = vst [vmem:[%s279 + $0x198] sm:$0xff] 0.0
          %343 = vst [vmem:[%s279 + $0x1a0] sm:$0xff] 0.0
          %344 = vst [vmem:[%s279 + $0x1a8] sm:$0xff] 0.0
          %345 = vst [vmem:[%s279 + $0x1b0] sm:$0xff] 0.0
          %346 = vst [vmem:[%s279 + $0x1b8] sm:$0xff] 0.0
          %347 = vst [vmem:[%s279 + $0x1c0] sm:$0xff] 0.0
          %348 = vst [vmem:[%s279 + $0x1c8] sm:$0xff] 0.0
          %349 = vst [vmem:[%s279 + $0x1d0] sm:$0xff] 0.0
          %350 = vst [vmem:[%s279 + $0x1d8] sm:$0xff] 0.0
          %351 = vst [vmem:[%s279 + $0x1e0] sm:$0xff] 0.0
          %352 = vst [vmem:[%s279 + $0x1e8] sm:$0xff] 0.0
          %353 = vst [vmem:[%s279 + $0x1f0] sm:$0xff] 0.0
          %354 = vst [vmem:[%s279 + $0x1f8] sm:$0xff] 0.0
          %355 = vst [vmem:[%s279 + $0x200] sm:$0xff] 0.0
          %356 = vst [vmem:[%s279 + $0x208] sm:$0xff] 0.0
          %357 = vst [vmem:[%s279 + $0x210] sm:$0xff] 0.0
          %358 = vst [vmem:[%s279 + $0x218] sm:$0xff] 0.0
          %359 = vst [vmem:[%s279 + $0x220] sm:$0xff] 0.0
          %360 = vst [vmem:[%s279 + $0x228] sm:$0xff] 0.0
          %361 = vst [vmem:[%s279 + $0x230] sm:$0xff] 0.0
          %362 = vst [vmem:[%s279 + $0x238] sm:$0xff] 0.0
          %363 = vst [vmem:[%s279 + $0x240] sm:$0xff] 0.0
          %364 = vst [vmem:[%s279 + $0x248] sm:$0xff] 0.0
          %365 = vst [vmem:[%s279 + $0x250] sm:$0xff] 0.0
          %366 = vst [vmem:[%s279 + $0x258] sm:$0xff] 0.0
          %367 = vst [vmem:[%s279 + $0x260] sm:$0xff] 0.0
          %368 = vst [vmem:[%s279 + $0x268] sm:$0xff] 0.0
          %369 = vst [vmem:[%s279 + $0x270] sm:$0xff] 0.0
          %370 = vst [vmem:[%s279 + $0x278] sm:$0xff] 0.0
          %371 = vst [vmem:[%s279 + $0x280] sm:$0xff] 0.0
          %372 = vst [vmem:[%s279 + $0x288] sm:$0xff] 0.0
          %373 = vst [vmem:[%s279 + $0x290] sm:$0xff] 0.0
          %374 = vst [vmem:[%s279 + $0x298] sm:$0xff] 0.0
          %375 = vst [vmem:[%s279 + $0x2a0] sm:$0xff] 0.0
          %376 = vst [vmem:[%s279 + $0x2a8] sm:$0xff] 0.0
          %377 = vst [vmem:[%s279 + $0x2b0] sm:$0xff] 0.0
          %378 = vst [vmem:[%s279 + $0x2b8] sm:$0xff] 0.0
          %379 = vst [vmem:[%s279 + $0x2c0] sm:$0xff] 0.0
          %380 = vst [vmem:[%s279 + $0x2c8] sm:$0xff] 0.0
          %381 = vst [vmem:[%s279 + $0x2d0] sm:$0xff] 0.0
          %382 = vst [vmem:[%s279 + $0x2d8] sm:$0xff] 0.0
          %383 = vst [vmem:[%s279 + $0x2e0] sm:$0xff] 0.0
          %384 = vst [vmem:[%s279 + $0x2e8] sm:$0xff] 0.0
          %385 = vst [vmem:[%s279 + $0x2f0] sm:$0xff] 0.0
          %386 = vst [vmem:[%s279 + $0x2f8] sm:$0xff] 0.0
        $region48: #{tpu_custom_call.1} parent=31 // pred_fallthru
          _
        %v387 = vld [vmem:[%s279] sm:$0xff]
        %v388 = vld [vmem:[%s279 + $0x8] sm:$0xff]
        %v389 = vld [vmem:[%s279 + $0x10] sm:$0xff]
        %v390 = vld [vmem:[%s279 + $0x18] sm:$0xff]
        %v391 = vld [vmem:[%s279 + $0x20] sm:$0xff]
        %v392 = vld [vmem:[%s279 + $0x28] sm:$0xff]
        %v393 = vld [vmem:[%s279 + $0x30] sm:$0xff]
        %v394 = vld [vmem:[%s279 + $0x38] sm:$0xff]
        %v395 = vld [vmem:[%s279 + $0x40] sm:$0xff]
        %v396 = vld [vmem:[%s279 + $0x48] sm:$0xff]
        %v397 = vld [vmem:[%s279 + $0x50] sm:$0xff]
        %v398 = vld [vmem:[%s279 + $0x58] sm:$0xff]
        %v399 = vld [vmem:[%s279 + $0x60] sm:$0xff]
        %v400 = vld [vmem:[%s279 + $0x68] sm:$0xff]
        %v401 = vld [vmem:[%s279 + $0x70] sm:$0xff]
        %v402 = vld [vmem:[%s279 + $0x78] sm:$0xff]
        %v403 = vld [vmem:[%s279 + $0x80] sm:$0xff]
        %v404 = vld [vmem:[%s279 + $0x88] sm:$0xff]
        %v405 = vld [vmem:[%s279 + $0x90] sm:$0xff]
        %v406 = vld [vmem:[%s279 + $0x98] sm:$0xff]
        %v407 = vld [vmem:[%s279 + $0xa0] sm:$0xff]
        %v408 = vld [vmem:[%s279 + $0xa8] sm:$0xff]
        %v409 = vld [vmem:[%s279 + $0xb0] sm:$0xff]
        %v410 = vld [vmem:[%s279 + $0xb8] sm:$0xff]
        %v411 = vld [vmem:[%s279 + $0xc0] sm:$0xff]
        %v412 = vld [vmem:[%s279 + $0xc8] sm:$0xff]
        %v413 = vld [vmem:[%s279 + $0xd0] sm:$0xff]
        %v414 = vld [vmem:[%s279 + $0xd8] sm:$0xff]
        %v415 = vld [vmem:[%s279 + $0xe0] sm:$0xff]
        %v416 = vld [vmem:[%s279 + $0xe8] sm:$0xff]
        %v417 = vld [vmem:[%s279 + $0xf0] sm:$0xff]
        %v418 = vld [vmem:[%s279 + $0xf8] sm:$0xff]
        %v419 = vld [vmem:[%s279 + $0x100] sm:$0xff]
        %v420 = vld [vmem:[%s279 + $0x108] sm:$0xff]
        %v421 = vld [vmem:[%s279 + $0x110] sm:$0xff]
        %v422 = vld [vmem:[%s279 + $0x118] sm:$0xff]
        %v423 = vld [vmem:[%s279 + $0x120] sm:$0xff]
        %v424 = vld [vmem:[%s279 + $0x128] sm:$0xff]
        %v425 = vld [vmem:[%s279 + $0x130] sm:$0xff]
        %v426 = vld [vmem:[%s279 + $0x138] sm:$0xff]
        %v427 = vld [vmem:[%s279 + $0x140] sm:$0xff]
        %v428 = vld [vmem:[%s279 + $0x148] sm:$0xff]
        %v429 = vld [vmem:[%s279 + $0x150] sm:$0xff]
        %v430 = vld [vmem:[%s279 + $0x158] sm:$0xff]
        %v431 = vld [vmem:[%s279 + $0x160] sm:$0xff]
        %v432 = vld [vmem:[%s279 + $0x168] sm:$0xff]
        %v433 = vld [vmem:[%s279 + $0x170] sm:$0xff]
        %v434 = vld [vmem:[%s279 + $0x178] sm:$0xff]
        %v435 = vld [vmem:[%s279 + $0x180] sm:$0xff]
        %v436 = vld [vmem:[%s279 + $0x188] sm:$0xff]
        %v437 = vld [vmem:[%s279 + $0x190] sm:$0xff]
        %v438 = vld [vmem:[%s279 + $0x198] sm:$0xff]
        %v439 = vld [vmem:[%s279 + $0x1a0] sm:$0xff]
        %v440 = vld [vmem:[%s279 + $0x1a8] sm:$0xff]
        %v441 = vld [vmem:[%s279 + $0x1b0] sm:$0xff]
        %v442 = vld [vmem:[%s279 + $0x1b8] sm:$0xff]
        %v443 = vld [vmem:[%s279 + $0x1c0] sm:$0xff]
        %v444 = vld [vmem:[%s279 + $0x1c8] sm:$0xff]
        %v445 = vld [vmem:[%s279 + $0x1d0] sm:$0xff]
        %v446 = vld [vmem:[%s279 + $0x1d8] sm:$0xff]
        %v447 = vld [vmem:[%s279 + $0x1e0] sm:$0xff]
        %v448 = vld [vmem:[%s279 + $0x1e8] sm:$0xff]
        %v449 = vld [vmem:[%s279 + $0x1f0] sm:$0xff]
        %v450 = vld [vmem:[%s279 + $0x1f8] sm:$0xff]
        %v451 = vld [vmem:[%s279 + $0x200] sm:$0xff]
        %v452 = vld [vmem:[%s279 + $0x208] sm:$0xff]
        %v453 = vld [vmem:[%s279 + $0x210] sm:$0xff]
        %v454 = vld [vmem:[%s279 + $0x218] sm:$0xff]
        %v455 = vld [vmem:[%s279 + $0x220] sm:$0xff]
        %v456 = vld [vmem:[%s279 + $0x228] sm:$0xff]
        %v457 = vld [vmem:[%s279 + $0x230] sm:$0xff]
        %v458 = vld [vmem:[%s279 + $0x238] sm:$0xff]
        %v459 = vld [vmem:[%s279 + $0x240] sm:$0xff]
        %v460 = vld [vmem:[%s279 + $0x248] sm:$0xff]
        %v461 = vld [vmem:[%s279 + $0x250] sm:$0xff]
        %v462 = vld [vmem:[%s279 + $0x258] sm:$0xff]
        %v463 = vld [vmem:[%s279 + $0x260] sm:$0xff]
        %v464 = vld [vmem:[%s279 + $0x268] sm:$0xff]
        %v465 = vld [vmem:[%s279 + $0x270] sm:$0xff]
        %v466 = vld [vmem:[%s279 + $0x278] sm:$0xff]
        %v467 = vld [vmem:[%s279 + $0x280] sm:$0xff]
        %v468 = vld [vmem:[%s279 + $0x288] sm:$0xff]
        %v469 = vld [vmem:[%s279 + $0x290] sm:$0xff]
        %v470 = vld [vmem:[%s279 + $0x298] sm:$0xff]
        %v471 = vld [vmem:[%s279 + $0x2a0] sm:$0xff]
        %v472 = vld [vmem:[%s279 + $0x2a8] sm:$0xff]
        %v473 = vld [vmem:[%s279 + $0x2b0] sm:$0xff]
        %v474 = vld [vmem:[%s279 + $0x2b8] sm:$0xff]
        %v475 = vld [vmem:[%s279 + $0x2c0] sm:$0xff]
        %v476 = vld [vmem:[%s279 + $0x2c8] sm:$0xff]
        %v477 = vld [vmem:[%s279 + $0x2d0] sm:$0xff]
        %v478 = vld [vmem:[%s279 + $0x2d8] sm:$0xff]
        %v479 = vld [vmem:[%s279 + $0x2e0] sm:$0xff]
        %v480 = vld [vmem:[%s279 + $0x2e8] sm:$0xff]
        %v481 = vld [vmem:[%s279 + $0x2f0] sm:$0xff]
        %v482 = vld [vmem:[%s279 + $0x2f8] sm:$0xff]
        %v483 = vld [vmem:[%s239] sm:$0xff]
        %v484 = vld [vmem:[%s239 + $0x8] sm:$0xff]
        %v485 = vld [vmem:[%s239 + $0x10] sm:$0xff]
        %v486 = vld [vmem:[%s239 + $0x18] sm:$0xff]
        %v487 = vld [vmem:[%s239 + $0x20] sm:$0xff]
        %v488 = vld [vmem:[%s239 + $0x28] sm:$0xff]
        %v489 = vld [vmem:[%s239 + $0x30] sm:$0xff]
        %v490 = vld [vmem:[%s239 + $0x38] sm:$0xff]
        %v491 = vld [vmem:[%s239 + $0x40] sm:$0xff]
        %v492 = vld [vmem:[%s239 + $0x48] sm:$0xff]
        %v493 = vld [vmem:[%s239 + $0x50] sm:$0xff]
        %v494 = vld [vmem:[%s239 + $0x58] sm:$0xff]
        %v495 = vld [vmem:[%s239 + $0x60] sm:$0xff]
        %v496 = vld [vmem:[%s239 + $0x68] sm:$0xff]
        %v497 = vld [vmem:[%s239 + $0x70] sm:$0xff]
        %v498 = vld [vmem:[%s239 + $0x78] sm:$0xff]
        %v499 = vld [vmem:[%s239 + $0x80] sm:$0xff]
        %v500 = vld [vmem:[%s239 + $0x88] sm:$0xff]
        %v501 = vld [vmem:[%s239 + $0x90] sm:$0xff]
        %v502 = vld [vmem:[%s239 + $0x98] sm:$0xff]
        %v503 = vld [vmem:[%s239 + $0xa0] sm:$0xff]
        %v504 = vld [vmem:[%s239 + $0xa8] sm:$0xff]
        %v505 = vld [vmem:[%s239 + $0xb0] sm:$0xff]
        %v506 = vld [vmem:[%s239 + $0xb8] sm:$0xff]
        %v507 = vld [vmem:[%s239 + $0xc0] sm:$0xff]
        %v508 = vld [vmem:[%s239 + $0xc8] sm:$0xff]
        %v509 = vld [vmem:[%s239 + $0xd0] sm:$0xff]
        %v510 = vld [vmem:[%s239 + $0xd8] sm:$0xff]
        %v511 = vld [vmem:[%s239 + $0xe0] sm:$0xff]
        %v512 = vld [vmem:[%s239 + $0xe8] sm:$0xff]
        %v513 = vld [vmem:[%s239 + $0xf0] sm:$0xff]
        %v514 = vld [vmem:[%s239 + $0xf8] sm:$0xff]
        %v515 = vld [vmem:[%s239 + $0x100] sm:$0xff]
        %v516 = vld [vmem:[%s239 + $0x108] sm:$0xff]
        %v517 = vld [vmem:[%s239 + $0x110] sm:$0xff]
        %v518 = vld [vmem:[%s239 + $0x118] sm:$0xff]
        %v519 = vld [vmem:[%s239 + $0x120] sm:$0xff]
        %v520 = vld [vmem:[%s239 + $0x128] sm:$0xff]
        %v521 = vld [vmem:[%s239 + $0x130] sm:$0xff]
        %v522 = vld [vmem:[%s239 + $0x138] sm:$0xff]
        %v523 = vld [vmem:[%s239 + $0x140] sm:$0xff]
        %v524 = vld [vmem:[%s239 + $0x148] sm:$0xff]
        %v525 = vld [vmem:[%s239 + $0x150] sm:$0xff]
        %v526 = vld [vmem:[%s239 + $0x158] sm:$0xff]
        %v527 = vld [vmem:[%s239 + $0x160] sm:$0xff]
        %v528 = vld [vmem:[%s239 + $0x168] sm:$0xff]
        %v529 = vld [vmem:[%s239 + $0x170] sm:$0xff]
        %v530 = vld [vmem:[%s239 + $0x178] sm:$0xff]
        %v531 = vld [vmem:[%s239 + $0x180] sm:$0xff]
        %v532 = vld [vmem:[%s239 + $0x188] sm:$0xff]
        %v533 = vld [vmem:[%s239 + $0x190] sm:$0xff]
        %v534 = vld [vmem:[%s239 + $0x198] sm:$0xff]
        %v535 = vld [vmem:[%s239 + $0x1a0] sm:$0xff]
        %v536 = vld [vmem:[%s239 + $0x1a8] sm:$0xff]
        %v537 = vld [vmem:[%s239 + $0x1b0] sm:$0xff]
        %v538 = vld [vmem:[%s239 + $0x1b8] sm:$0xff]
        %v539 = vld [vmem:[%s239 + $0x1c0] sm:$0xff]
        %v540 = vld [vmem:[%s239 + $0x1c8] sm:$0xff]
        %v541 = vld [vmem:[%s239 + $0x1d0] sm:$0xff]
        %v542 = vld [vmem:[%s239 + $0x1d8] sm:$0xff]
        %v543 = vld [vmem:[%s239 + $0x1e0] sm:$0xff]
        %v544 = vld [vmem:[%s239 + $0x1e8] sm:$0xff]
        %v545 = vld [vmem:[%s239 + $0x1f0] sm:$0xff]
        %v546 = vld [vmem:[%s239 + $0x1f8] sm:$0xff]
        %v547 = vld [vmem:[%s239 + $0x200] sm:$0xff]
        %v548 = vld [vmem:[%s239 + $0x208] sm:$0xff]
        %v549 = vld [vmem:[%s239 + $0x210] sm:$0xff]
        %v550 = vld [vmem:[%s239 + $0x218] sm:$0xff]
        %v551 = vld [vmem:[%s239 + $0x220] sm:$0xff]
        %v552 = vld [vmem:[%s239 + $0x228] sm:$0xff]
        %v553 = vld [vmem:[%s239 + $0x230] sm:$0xff]
        %v554 = vld [vmem:[%s239 + $0x238] sm:$0xff]
        %v555 = vld [vmem:[%s239 + $0x240] sm:$0xff]
        %v556 = vld [vmem:[%s239 + $0x248] sm:$0xff]
        %v557 = vld [vmem:[%s239 + $0x250] sm:$0xff]
        %v558 = vld [vmem:[%s239 + $0x258] sm:$0xff]
        %v559 = vld [vmem:[%s239 + $0x260] sm:$0xff]
        %v560 = vld [vmem:[%s239 + $0x268] sm:$0xff]
        %v561 = vld [vmem:[%s239 + $0x270] sm:$0xff]
        %v562 = vld [vmem:[%s239 + $0x278] sm:$0xff]
        %v563 = vld [vmem:[%s239 + $0x280] sm:$0xff]
        %v564 = vld [vmem:[%s239 + $0x288] sm:$0xff]
        %v565 = vld [vmem:[%s239 + $0x290] sm:$0xff]
        %v566 = vld [vmem:[%s239 + $0x298] sm:$0xff]
        %v567 = vld [vmem:[%s239 + $0x2a0] sm:$0xff]
        %v568 = vld [vmem:[%s239 + $0x2a8] sm:$0xff]
        %v569 = vld [vmem:[%s239 + $0x2b0] sm:$0xff]
        %v570 = vld [vmem:[%s239 + $0x2b8] sm:$0xff]
        %v571 = vld [vmem:[%s239 + $0x2c0] sm:$0xff]
        %v572 = vld [vmem:[%s239 + $0x2c8] sm:$0xff]
        %v573 = vld [vmem:[%s239 + $0x2d0] sm:$0xff]
        %v574 = vld [vmem:[%s239 + $0x2d8] sm:$0xff]
        %v575 = vld [vmem:[%s239 + $0x2e0] sm:$0xff]
        %v576 = vld [vmem:[%s239 + $0x2e8] sm:$0xff]
        %v577 = vld [vmem:[%s239 + $0x2f0] sm:$0xff]
        %v578 = vld [vmem:[%s239 + $0x2f8] sm:$0xff]
        %v579 = vld [vmem:[%s239 + $0x300] sm:$0xff]
        %v580 = vld [vmem:[%s239 + $0x308] sm:$0xff]
        %v581 = vld [vmem:[%s239 + $0x310] sm:$0xff]
        %v582 = vld [vmem:[%s239 + $0x318] sm:$0xff]
        %v583 = vld [vmem:[%s239 + $0x320] sm:$0xff]
        %v584 = vld [vmem:[%s239 + $0x328] sm:$0xff]
        %v585 = vld [vmem:[%s239 + $0x330] sm:$0xff]
        %v586 = vld [vmem:[%s239 + $0x338] sm:$0xff]
        %v587 = vld [vmem:[%s239 + $0x340] sm:$0xff]
        %v588 = vld [vmem:[%s239 + $0x348] sm:$0xff]
        %v589 = vld [vmem:[%s239 + $0x350] sm:$0xff]
        %v590 = vld [vmem:[%s239 + $0x358] sm:$0xff]
        %v591 = vld [vmem:[%s239 + $0x360] sm:$0xff]
        %v592 = vld [vmem:[%s239 + $0x368] sm:$0xff]
        %v593 = vld [vmem:[%s239 + $0x370] sm:$0xff]
        %v594 = vld [vmem:[%s239 + $0x378] sm:$0xff]
        %v595 = vld [vmem:[%s239 + $0x380] sm:$0xff]
        %v596 = vld [vmem:[%s239 + $0x388] sm:$0xff]
        %v597 = vld [vmem:[%s239 + $0x390] sm:$0xff]
        %v598 = vld [vmem:[%s239 + $0x398] sm:$0xff]
        %v599 = vld [vmem:[%s239 + $0x3a0] sm:$0xff]
        %v600 = vld [vmem:[%s239 + $0x3a8] sm:$0xff]
        %v601 = vld [vmem:[%s239 + $0x3b0] sm:$0xff]
        %v602 = vld [vmem:[%s239 + $0x3b8] sm:$0xff]
        %v603 = vld [vmem:[%s239 + $0x3c0] sm:$0xff]
        %v604 = vld [vmem:[%s239 + $0x3c8] sm:$0xff]
        %v605 = vld [vmem:[%s239 + $0x3d0] sm:$0xff]
        %v606 = vld [vmem:[%s239 + $0x3d8] sm:$0xff]
        %v607 = vld [vmem:[%s239 + $0x3e0] sm:$0xff]
        %v608 = vld [vmem:[%s239 + $0x3e8] sm:$0xff]
        %v609 = vld [vmem:[%s239 + $0x3f0] sm:$0xff]
        %v610 = vld [vmem:[%s239 + $0x3f8] sm:$0xff]
        %v611 = vld [vmem:[%s248] sm:$0xff]
        %v612 = vld [vmem:[%s248 + $0x8] sm:$0xff]
        %v613 = vld [vmem:[%s248 + $0x10] sm:$0xff]
        %v614 = vld [vmem:[%s248 + $0x18] sm:$0xff]
        %v615 = vld [vmem:[%s248 + $0x20] sm:$0xff]
        %v616 = vld [vmem:[%s248 + $0x28] sm:$0xff]
        %v617 = vld [vmem:[%s248 + $0x30] sm:$0xff]
        %v618 = vld [vmem:[%s248 + $0x38] sm:$0xff]
        %v619 = vld [vmem:[%s248 + $0x40] sm:$0xff]
        %v620 = vld [vmem:[%s248 + $0x48] sm:$0xff]
        %v621 = vld [vmem:[%s248 + $0x50] sm:$0xff]
        %v622 = vld [vmem:[%s248 + $0x58] sm:$0xff]
        %v623 = vld [vmem:[%s248 + $0x60] sm:$0xff]
        %v624 = vld [vmem:[%s248 + $0x68] sm:$0xff]
        %v625 = vld [vmem:[%s248 + $0x70] sm:$0xff]
        %v626 = vld [vmem:[%s248 + $0x78] sm:$0xff]
        %v627 = vld [vmem:[%s248 + $0x80] sm:$0xff]
        %v628 = vld [vmem:[%s248 + $0x88] sm:$0xff]
        %v629 = vld [vmem:[%s248 + $0x90] sm:$0xff]
        %v630 = vld [vmem:[%s248 + $0x98] sm:$0xff]
        %v631 = vld [vmem:[%s248 + $0xa0] sm:$0xff]
        %v632 = vld [vmem:[%s248 + $0xa8] sm:$0xff]
        %v633 = vld [vmem:[%s248 + $0xb0] sm:$0xff]
        %v634 = vld [vmem:[%s248 + $0xb8] sm:$0xff]
        %v635 = vld [vmem:[%s248 + $0xc0] sm:$0xff]
        %v636 = vld [vmem:[%s248 + $0xc8] sm:$0xff]
        %v637 = vld [vmem:[%s248 + $0xd0] sm:$0xff]
        %v638 = vld [vmem:[%s248 + $0xd8] sm:$0xff]
        %v639 = vld [vmem:[%s248 + $0xe0] sm:$0xff]
        %v640 = vld [vmem:[%s248 + $0xe8] sm:$0xff]
        %v641 = vld [vmem:[%s248 + $0xf0] sm:$0xff]
        %v642 = vld [vmem:[%s248 + $0xf8] sm:$0xff]
        %v643 = vld [vmem:[%s248 + $0x100] sm:$0xff]
        %v644 = vld [vmem:[%s248 + $0x108] sm:$0xff]
        %v645 = vld [vmem:[%s248 + $0x110] sm:$0xff]
        %v646 = vld [vmem:[%s248 + $0x118] sm:$0xff]
        %v647 = vld [vmem:[%s248 + $0x120] sm:$0xff]
        %v648 = vld [vmem:[%s248 + $0x128] sm:$0xff]
        %v649 = vld [vmem:[%s248 + $0x130] sm:$0xff]
        %v650 = vld [vmem:[%s248 + $0x138] sm:$0xff]
        %v651 = vld [vmem:[%s248 + $0x140] sm:$0xff]
        %v652 = vld [vmem:[%s248 + $0x148] sm:$0xff]
        %v653 = vld [vmem:[%s248 + $0x150] sm:$0xff]
        %v654 = vld [vmem:[%s248 + $0x158] sm:$0xff]
        %v655 = vld [vmem:[%s248 + $0x160] sm:$0xff]
        %v656 = vld [vmem:[%s248 + $0x168] sm:$0xff]
        %v657 = vld [vmem:[%s248 + $0x170] sm:$0xff]
        %v658 = vld [vmem:[%s248 + $0x178] sm:$0xff]
        %v659 = vld [vmem:[%s248 + $0x180] sm:$0xff]
        %v660 = vld [vmem:[%s248 + $0x188] sm:$0xff]
        %v661 = vld [vmem:[%s248 + $0x190] sm:$0xff]
        %v662 = vld [vmem:[%s248 + $0x198] sm:$0xff]
        %v663 = vld [vmem:[%s248 + $0x1a0] sm:$0xff]
        %v664 = vld [vmem:[%s248 + $0x1a8] sm:$0xff]
        %v665 = vld [vmem:[%s248 + $0x1b0] sm:$0xff]
        %v666 = vld [vmem:[%s248 + $0x1b8] sm:$0xff]
        %v667 = vld [vmem:[%s248 + $0x1c0] sm:$0xff]
        %v668 = vld [vmem:[%s248 + $0x1c8] sm:$0xff]
        %v669 = vld [vmem:[%s248 + $0x1d0] sm:$0xff]
        %v670 = vld [vmem:[%s248 + $0x1d8] sm:$0xff]
        %v671 = vld [vmem:[%s248 + $0x1e0] sm:$0xff]
        %v672 = vld [vmem:[%s248 + $0x1e8] sm:$0xff]
        %v673 = vld [vmem:[%s248 + $0x1f0] sm:$0xff]
        %v674 = vld [vmem:[%s248 + $0x1f8] sm:$0xff]
        %v675 = vld [vmem:[%s248 + $0x200] sm:$0xff]
        %v676 = vld [vmem:[%s248 + $0x208] sm:$0xff]
        %v677 = vld [vmem:[%s248 + $0x210] sm:$0xff]
        %v678 = vld [vmem:[%s248 + $0x218] sm:$0xff]
        %v679 = vld [vmem:[%s248 + $0x220] sm:$0xff]
        %v680 = vld [vmem:[%s248 + $0x228] sm:$0xff]
        %v681 = vld [vmem:[%s248 + $0x230] sm:$0xff]
        %v682 = vld [vmem:[%s248 + $0x238] sm:$0xff]
        %v683 = vld [vmem:[%s248 + $0x240] sm:$0xff]
        %v684 = vld [vmem:[%s248 + $0x248] sm:$0xff]
        %v685 = vld [vmem:[%s248 + $0x250] sm:$0xff]
        %v686 = vld [vmem:[%s248 + $0x258] sm:$0xff]
        %v687 = vld [vmem:[%s248 + $0x260] sm:$0xff]
        %v688 = vld [vmem:[%s248 + $0x268] sm:$0xff]
        %v689 = vld [vmem:[%s248 + $0x270] sm:$0xff]
        %v690 = vld [vmem:[%s248 + $0x278] sm:$0xff]
        %v691 = vld [vmem:[%s248 + $0x280] sm:$0xff]
        %v692 = vld [vmem:[%s248 + $0x288] sm:$0xff]
        %v693 = vld [vmem:[%s248 + $0x290] sm:$0xff]
        %v694 = vld [vmem:[%s248 + $0x298] sm:$0xff]
        %v695 = vld [vmem:[%s248 + $0x2a0] sm:$0xff]
        %v696 = vld [vmem:[%s248 + $0x2a8] sm:$0xff]
        %v697 = vld [vmem:[%s248 + $0x2b0] sm:$0xff]
        %v698 = vld [vmem:[%s248 + $0x2b8] sm:$0xff]
        %v699 = vld [vmem:[%s248 + $0x2c0] sm:$0xff]
        %v700 = vld [vmem:[%s248 + $0x2c8] sm:$0xff]
        %v701 = vld [vmem:[%s248 + $0x2d0] sm:$0xff]
        %v702 = vld [vmem:[%s248 + $0x2d8] sm:$0xff]
        %v703 = vld [vmem:[%s248 + $0x2e0] sm:$0xff]
        %v704 = vld [vmem:[%s248 + $0x2e8] sm:$0xff]
        %v705 = vld [vmem:[%s248 + $0x2f0] sm:$0xff]
        %v706 = vld [vmem:[%s248 + $0x2f8] sm:$0xff]
        %v707 = vld [vmem:[%s248 + $0x300] sm:$0xff]
        %v708 = vld [vmem:[%s248 + $0x308] sm:$0xff]
        %v709 = vld [vmem:[%s248 + $0x310] sm:$0xff]
        %v710 = vld [vmem:[%s248 + $0x318] sm:$0xff]
        %v711 = vld [vmem:[%s248 + $0x320] sm:$0xff]
        %v712 = vld [vmem:[%s248 + $0x328] sm:$0xff]
        %v713 = vld [vmem:[%s248 + $0x330] sm:$0xff]
        %v714 = vld [vmem:[%s248 + $0x338] sm:$0xff]
        %v715 = vld [vmem:[%s248 + $0x340] sm:$0xff]
        %v716 = vld [vmem:[%s248 + $0x348] sm:$0xff]
        %v717 = vld [vmem:[%s248 + $0x350] sm:$0xff]
        %v718 = vld [vmem:[%s248 + $0x358] sm:$0xff]
        %v719 = vld [vmem:[%s248 + $0x360] sm:$0xff]
        %v720 = vld [vmem:[%s248 + $0x368] sm:$0xff]
        %v721 = vld [vmem:[%s248 + $0x370] sm:$0xff]
        %v722 = vld [vmem:[%s248 + $0x378] sm:$0xff]
        %v723 = vld [vmem:[%s248 + $0x380] sm:$0xff]
        %v724 = vld [vmem:[%s248 + $0x388] sm:$0xff]
        %v725 = vld [vmem:[%s248 + $0x390] sm:$0xff]
        %v726 = vld [vmem:[%s248 + $0x398] sm:$0xff]
        %v727 = vld [vmem:[%s248 + $0x3a0] sm:$0xff]
        %v728 = vld [vmem:[%s248 + $0x3a8] sm:$0xff]
        %v729 = vld [vmem:[%s248 + $0x3b0] sm:$0xff]
        %v730 = vld [vmem:[%s248 + $0x3b8] sm:$0xff]
        %v731 = vld [vmem:[%s248 + $0x3c0] sm:$0xff]
        %v732 = vld [vmem:[%s248 + $0x3c8] sm:$0xff]
        %v733 = vld [vmem:[%s248 + $0x3d0] sm:$0xff]
        %v734 = vld [vmem:[%s248 + $0x3d8] sm:$0xff]
        %v735 = vld [vmem:[%s248 + $0x3e0] sm:$0xff]
        %v736 = vld [vmem:[%s248 + $0x3e8] sm:$0xff]
        %v737 = vld [vmem:[%s248 + $0x3f0] sm:$0xff]
        %v738 = vld [vmem:[%s248 + $0x3f8] sm:$0xff]
        %v739 = vld [vmem:[%s248 + $0x400] sm:$0xff]
        %v740 = vld [vmem:[%s248 + $0x408] sm:$0xff]
        %v741 = vld [vmem:[%s248 + $0x410] sm:$0xff]
        %v742 = vld [vmem:[%s248 + $0x418] sm:$0xff]
        %v743 = vld [vmem:[%s248 + $0x420] sm:$0xff]
        %v744 = vld [vmem:[%s248 + $0x428] sm:$0xff]
        %v745 = vld [vmem:[%s248 + $0x430] sm:$0xff]
        %v746 = vld [vmem:[%s248 + $0x438] sm:$0xff]
        %v747 = vld [vmem:[%s248 + $0x440] sm:$0xff]
        %v748 = vld [vmem:[%s248 + $0x448] sm:$0xff]
        %v749 = vld [vmem:[%s248 + $0x450] sm:$0xff]
        %v750 = vld [vmem:[%s248 + $0x458] sm:$0xff]
        %v751 = vld [vmem:[%s248 + $0x460] sm:$0xff]
        %v752 = vld [vmem:[%s248 + $0x468] sm:$0xff]
        %v753 = vld [vmem:[%s248 + $0x470] sm:$0xff]
        %v754 = vld [vmem:[%s248 + $0x478] sm:$0xff]
        %v755 = vld [vmem:[%s248 + $0x480] sm:$0xff]
        %v756 = vld [vmem:[%s248 + $0x488] sm:$0xff]
        %v757 = vld [vmem:[%s248 + $0x490] sm:$0xff]
        %v758 = vld [vmem:[%s248 + $0x498] sm:$0xff]
        %v759 = vld [vmem:[%s248 + $0x4a0] sm:$0xff]
        %v760 = vld [vmem:[%s248 + $0x4a8] sm:$0xff]
        %v761 = vld [vmem:[%s248 + $0x4b0] sm:$0xff]
        %v762 = vld [vmem:[%s248 + $0x4b8] sm:$0xff]
        %v763 = vld [vmem:[%s248 + $0x4c0] sm:$0xff]
        %v764 = vld [vmem:[%s248 + $0x4c8] sm:$0xff]
        %v765 = vld [vmem:[%s248 + $0x4d0] sm:$0xff]
        %v766 = vld [vmem:[%s248 + $0x4d8] sm:$0xff]
        %v767 = vld [vmem:[%s248 + $0x4e0] sm:$0xff]
        %v768 = vld [vmem:[%s248 + $0x4e8] sm:$0xff]
        %v769 = vld [vmem:[%s248 + $0x4f0] sm:$0xff]
        %v770 = vld [vmem:[%s248 + $0x4f8] sm:$0xff]
        %v771 = vld [vmem:[%s248 + $0x500] sm:$0xff]
        %v772 = vld [vmem:[%s248 + $0x508] sm:$0xff]
        %v773 = vld [vmem:[%s248 + $0x510] sm:$0xff]
        %v774 = vld [vmem:[%s248 + $0x518] sm:$0xff]
        %v775 = vld [vmem:[%s248 + $0x520] sm:$0xff]
        %v776 = vld [vmem:[%s248 + $0x528] sm:$0xff]
        %v777 = vld [vmem:[%s248 + $0x530] sm:$0xff]
        %v778 = vld [vmem:[%s248 + $0x538] sm:$0xff]
        %v779 = vld [vmem:[%s248 + $0x540] sm:$0xff]
        %v780 = vld [vmem:[%s248 + $0x548] sm:$0xff]
        %v781 = vld [vmem:[%s248 + $0x550] sm:$0xff]
        %v782 = vld [vmem:[%s248 + $0x558] sm:$0xff]
        %v783 = vld [vmem:[%s248 + $0x560] sm:$0xff]
        %v784 = vld [vmem:[%s248 + $0x568] sm:$0xff]
        %v785 = vld [vmem:[%s248 + $0x570] sm:$0xff]
        %v786 = vld [vmem:[%s248 + $0x578] sm:$0xff]
        %v787 = vld [vmem:[%s248 + $0x580] sm:$0xff]
        %v788 = vld [vmem:[%s248 + $0x588] sm:$0xff]
        %v789 = vld [vmem:[%s248 + $0x590] sm:$0xff]
        %v790 = vld [vmem:[%s248 + $0x598] sm:$0xff]
        %v791 = vld [vmem:[%s248 + $0x5a0] sm:$0xff]
        %v792 = vld [vmem:[%s248 + $0x5a8] sm:$0xff]
        %v793 = vld [vmem:[%s248 + $0x5b0] sm:$0xff]
        %v794 = vld [vmem:[%s248 + $0x5b8] sm:$0xff]
        %v795 = vld [vmem:[%s248 + $0x5c0] sm:$0xff]
        %v796 = vld [vmem:[%s248 + $0x5c8] sm:$0xff]
        %v797 = vld [vmem:[%s248 + $0x5d0] sm:$0xff]
        %v798 = vld [vmem:[%s248 + $0x5d8] sm:$0xff]
        %v799 = vld [vmem:[%s248 + $0x5e0] sm:$0xff]
        %v800 = vld [vmem:[%s248 + $0x5e8] sm:$0xff]
        %v801 = vld [vmem:[%s248 + $0x5f0] sm:$0xff]
        %v802 = vld [vmem:[%s248 + $0x5f8] sm:$0xff]
        %803 = vmatprep.subr.mxu0 %v657
        %804 = vmatpush1.msra.mxu0 %v656
        %805 = vmatprep.subr.mxu0 %v654
        %806 = vmatpush1.msra.mxu0 %v653
        %807 = vmatprep.subr.mxu0 %v651
        %808 = vmatpush1.msra.mxu0 %v650
        %809 = vmatprep.subr.mxu0 %v648
        %810 = vmatpush1.msra.mxu0 %v647
        %811 = vmatprep.subr.mxu0 %v645
        %812 = vmatpush1.msra.mxu0 %v644
        %813 = vmatprep.subr.mxu0 %v642
        %814 = vmatpush1.msra.mxu0 %v641
        %815 = vmatprep.subr.mxu0 %v639
        %816 = vmatpush1.msra.mxu0 %v638
        %817 = vmatprep.subr.mxu0 %v636
        %818 = vmatpush1.msra.mxu0 %v635
        %819 = vmatprep.subr.mxu0 %v633
        %820 = vmatpush1.msra.mxu0 %v632
        %821 = vmatprep.subr.mxu0 %v630
        %822 = vmatpush1.msra.mxu0 %v629
        %823 = vmatprep.subr.mxu0 %v627
        %824 = vmatpush1.msra.mxu0 %v626
        %825 = vmatprep.subr.mxu0 %v624
        %826 = vmatpush1.msra.mxu0 %v623
        %827 = vmatprep.subr.mxu0 %v621
        %828 = vmatpush1.msra.mxu0 %v620
        %829 = vmatprep.subr.mxu0 %v618
        %830 = vmatpush1.msra.mxu0 %v617
        %831 = vmatprep.subr.mxu0 %v615
        %832 = vmatpush1.msra.mxu0 %v614
        %833 = vmatprep.subr.mxu0 %v612
        %834 = vmatpush1.msra.mxu0 %v611
        %835 = vmatprep.subr.mxu0 %v705
        %836 = vmatpush2.msra.mxu0 %v704
        %837 = vmatprep.subr.mxu0 %v702
        %838 = vmatpush2.msra.mxu0 %v701
        %839 = vmatprep.subr.mxu0 %v699
        %840 = vmatpush2.msra.mxu0 %v698
        %841 = vmatprep.subr.mxu0 %v696
        %842 = vmatpush2.msra.mxu0 %v695
        %843 = vmatprep.subr.mxu0 %v693
        %844 = vmatpush2.msra.mxu0 %v692
        %845 = vmatprep.subr.mxu0 %v690
        %846 = vmatpush2.msra.mxu0 %v689
        %847 = vmatprep.subr.mxu0 %v687
        %848 = vmatpush2.msra.mxu0 %v686
        %849 = vmatprep.subr.mxu0 %v684
        %850 = vmatpush2.msra.mxu0 %v683
        %851 = vmatprep.subr.mxu0 %v681
        %852 = vmatpush2.msra.mxu0 %v680
        %853 = vmatprep.subr.mxu0 %v678
        %854 = vmatpush2.msra.mxu0 %v677
        %855 = vmatprep.subr.mxu0 %v675
        %856 = vmatpush2.msra.mxu0 %v674
        %857 = vmatprep.subr.mxu0 %v672
        %858 = vmatpush2.msra.mxu0 %v671
        %859 = vmatprep.subr.mxu0 %v669
        %860 = vmatpush2.msra.mxu0 %v668
        %861 = vmatprep.subr.mxu0 %v666
        %862 = vmatpush2.msra.mxu0 %v665
        %863 = vmatprep.subr.mxu0 %v663
        %864 = vmatpush2.msra.mxu0 %v662
        %865 = vmatprep.subr.mxu0 %v660
        %866 = vmatpush2.msra.mxu0 %v659
        %867 = vmatprep.mubr.f32.mxu0 %v484
        %868 = vmatmul.mubr.f32.gmra.mxu0 %v483
        %v869 = vpop.f32.mrf.mxu0
        %v870 = vadd.f32 0.0, %v869
        %v871 = vpop.f32.mrf.mxu0
        %v872 = vadd.f32 0.0, %v871
        %873 = vmatprep.mubr.f32.mxu0 %v488
        %874 = vmatmul.mubr.f32.gmra.mxu0 %v487
        %v875 = vpop.f32.mrf.mxu0
        %v876 = vadd.f32 0.0, %v875
        %v877 = vpop.f32.mrf.mxu0
        %v878 = vadd.f32 0.0, %v877
        %879 = vmatprep.mubr.f32.mxu0 %v492
        %880 = vmatmul.mubr.f32.gmra.mxu0 %v491
        %v881 = vpop.f32.mrf.mxu0
        %v882 = vadd.f32 0.0, %v881
        %v883 = vpop.f32.mrf.mxu0
        %v884 = vadd.f32 0.0, %v883
        %885 = vmatprep.mubr.f32.mxu0 %v496
        %886 = vmatmul.mubr.f32.gmra.mxu0 %v495
        %v887 = vpop.f32.mrf.mxu0
        %v888 = vadd.f32 0.0, %v887
        %v889 = vpop.f32.mrf.mxu0
        %v890 = vadd.f32 0.0, %v889
        %891 = vmatprep.mubr.f32.mxu0 %v500
        %892 = vmatmul.mubr.f32.gmra.mxu0 %v499
        %v893 = vpop.f32.mrf.mxu0
        %v894 = vadd.f32 0.0, %v893
        %v895 = vpop.f32.mrf.mxu0
        %v896 = vadd.f32 0.0, %v895
        %897 = vmatprep.mubr.f32.mxu0 %v504
        %898 = vmatmul.mubr.f32.gmra.mxu0 %v503
        %v899 = vpop.f32.mrf.mxu0
        %v900 = vadd.f32 0.0, %v899
        %v901 = vpop.f32.mrf.mxu0
        %v902 = vadd.f32 0.0, %v901
        %903 = vmatprep.mubr.f32.mxu0 %v508
        %904 = vmatmul.mubr.f32.gmra.mxu0 %v507
        %v905 = vpop.f32.mrf.mxu0
        %v906 = vadd.f32 0.0, %v905
        %v907 = vpop.f32.mrf.mxu0
        %v908 = vadd.f32 0.0, %v907
        %909 = vmatprep.mubr.f32.mxu0 %v512
        %910 = vmatmul.mubr.f32.gmra.mxu0 %v511
        %v911 = vpop.f32.mrf.mxu0
        %v912 = vadd.f32 0.0, %v911
        %v913 = vpop.f32.mrf.mxu0
        %v914 = vadd.f32 0.0, %v913
        %915 = vmatprep.mubr.f32.mxu0 %v516
        %916 = vmatmul.mubr.f32.gmra.mxu0 %v515
        %v917 = vpop.f32.mrf.mxu0
        %v918 = vadd.f32 0.0, %v917
        %v919 = vpop.f32.mrf.mxu0
        %v920 = vadd.f32 0.0, %v919
        %921 = vmatprep.mubr.f32.mxu0 %v520
        %922 = vmatmul.mubr.f32.gmra.mxu0 %v519
        %v923 = vpop.f32.mrf.mxu0
        %v924 = vadd.f32 0.0, %v923
        %v925 = vpop.f32.mrf.mxu0
        %v926 = vadd.f32 0.0, %v925
        %927 = vmatprep.mubr.f32.mxu0 %v524
        %928 = vmatmul.mubr.f32.gmra.mxu0 %v523
        %v929 = vpop.f32.mrf.mxu0
        %v930 = vadd.f32 0.0, %v929
        %v931 = vpop.f32.mrf.mxu0
        %v932 = vadd.f32 0.0, %v931
        %933 = vmatprep.mubr.f32.mxu0 %v528
        %934 = vmatmul.mubr.f32.gmra.mxu0 %v527
        %v935 = vpop.f32.mrf.mxu0
        %v936 = vadd.f32 0.0, %v935
        %v937 = vpop.f32.mrf.mxu0
        %v938 = vadd.f32 0.0, %v937
        %939 = vmatprep.mubr.f32.mxu0 %v532
        %940 = vmatmul.mubr.f32.gmra.mxu0 %v531
        %v941 = vpop.f32.mrf.mxu0
        %v942 = vadd.f32 0.0, %v941
        %v943 = vpop.f32.mrf.mxu0
        %v944 = vadd.f32 0.0, %v943
        %945 = vmatprep.mubr.f32.mxu0 %v536
        %946 = vmatmul.mubr.f32.gmra.mxu0 %v535
        %v947 = vpop.f32.mrf.mxu0
        %v948 = vadd.f32 0.0, %v947
        %v949 = vpop.f32.mrf.mxu0
        %v950 = vadd.f32 0.0, %v949
        %951 = vmatprep.mubr.f32.mxu0 %v540
        %952 = vmatmul.mubr.f32.gmra.mxu0 %v539
        %v953 = vpop.f32.mrf.mxu0
        %v954 = vadd.f32 0.0, %v953
        %v955 = vpop.f32.mrf.mxu0
        %v956 = vadd.f32 0.0, %v955
        %957 = vmatprep.mubr.f32.mxu0 %v544
        %958 = vmatmul.mubr.f32.gmra.mxu0 %v543
        %v959 = vpop.f32.mrf.mxu0
        %v960 = vadd.f32 0.0, %v959
        %v961 = vpop.f32.mrf.mxu0
        %v962 = vadd.f32 0.0, %v961
        %963 = vmatprep.mubr.f32.mxu0 %v548
        %964 = vmatmul.mubr.f32.gmra.mxu0 %v547
        %v965 = vpop.f32.mrf.mxu0
        %v966 = vadd.f32 0.0, %v965
        %v967 = vpop.f32.mrf.mxu0
        %v968 = vadd.f32 0.0, %v967
        %969 = vmatprep.mubr.f32.mxu0 %v552
        %970 = vmatmul.mubr.f32.gmra.mxu0 %v551
        %v971 = vpop.f32.mrf.mxu0
        %v972 = vadd.f32 0.0, %v971
        %v973 = vpop.f32.mrf.mxu0
        %v974 = vadd.f32 0.0, %v973
        %975 = vmatprep.mubr.f32.mxu0 %v556
        %976 = vmatmul.mubr.f32.gmra.mxu0 %v555
        %v977 = vpop.f32.mrf.mxu0
        %v978 = vadd.f32 0.0, %v977
        %v979 = vpop.f32.mrf.mxu0
        %v980 = vadd.f32 0.0, %v979
        %981 = vmatprep.mubr.f32.mxu0 %v560
        %982 = vmatmul.mubr.f32.gmra.mxu0 %v559
        %v983 = vpop.f32.mrf.mxu0
        %v984 = vadd.f32 0.0, %v983
        %v985 = vpop.f32.mrf.mxu0
        %v986 = vadd.f32 0.0, %v985
        %987 = vmatprep.mubr.f32.mxu0 %v564
        %988 = vmatmul.mubr.f32.gmra.mxu0 %v563
        %v989 = vpop.f32.mrf.mxu0
        %v990 = vadd.f32 0.0, %v989
        %v991 = vpop.f32.mrf.mxu0
        %v992 = vadd.f32 0.0, %v991
        %993 = vmatprep.mubr.f32.mxu0 %v568
        %994 = vmatmul.mubr.f32.gmra.mxu0 %v567
        %v995 = vpop.f32.mrf.mxu0
        %v996 = vadd.f32 0.0, %v995
        %v997 = vpop.f32.mrf.mxu0
        %v998 = vadd.f32 0.0, %v997
        %999 = vmatprep.mubr.f32.mxu0 %v572
        %1000 = vmatmul.mubr.f32.gmra.mxu0 %v571
        %v1001 = vpop.f32.mrf.mxu0
        %v1002 = vadd.f32 0.0, %v1001
        %v1003 = vpop.f32.mrf.mxu0
        %v1004 = vadd.f32 0.0, %v1003
        %1005 = vmatprep.mubr.f32.mxu0 %v576
        %1006 = vmatmul.mubr.f32.gmra.mxu0 %v575
        %v1007 = vpop.f32.mrf.mxu0
        %v1008 = vadd.f32 0.0, %v1007
        %v1009 = vpop.f32.mrf.mxu0
        %v1010 = vadd.f32 0.0, %v1009
        %1011 = vmatprep.mubr.f32.mxu0 %v580
        %1012 = vmatmul.mubr.f32.gmra.mxu0 %v579
        %v1013 = vpop.f32.mrf.mxu0
        %v1014 = vadd.f32 0.0, %v1013
        %v1015 = vpop.f32.mrf.mxu0
        %v1016 = vadd.f32 0.0, %v1015
        %1017 = vmatprep.mubr.f32.mxu0 %v584
        %1018 = vmatmul.mubr.f32.gmra.mxu0 %v583
        %v1019 = vpop.f32.mrf.mxu0
        %v1020 = vadd.f32 0.0, %v1019
        %v1021 = vpop.f32.mrf.mxu0
        %v1022 = vadd.f32 0.0, %v1021
        %1023 = vmatprep.mubr.f32.mxu0 %v588
        %1024 = vmatmul.mubr.f32.gmra.mxu0 %v587
        %v1025 = vpop.f32.mrf.mxu0
        %v1026 = vadd.f32 0.0, %v1025
        %v1027 = vpop.f32.mrf.mxu0
        %v1028 = vadd.f32 0.0, %v1027
        %1029 = vmatprep.mubr.f32.mxu0 %v592
        %1030 = vmatmul.mubr.f32.gmra.mxu0 %v591
        %v1031 = vpop.f32.mrf.mxu0
        %v1032 = vadd.f32 0.0, %v1031
        %v1033 = vpop.f32.mrf.mxu0
        %v1034 = vadd.f32 0.0, %v1033
        %1035 = vmatprep.mubr.f32.mxu0 %v596
        %1036 = vmatmul.mubr.f32.gmra.mxu0 %v595
        %v1037 = vpop.f32.mrf.mxu0
        %v1038 = vadd.f32 0.0, %v1037
        %v1039 = vpop.f32.mrf.mxu0
        %v1040 = vadd.f32 0.0, %v1039
        %1041 = vmatprep.mubr.f32.mxu0 %v600
        %1042 = vmatmul.mubr.f32.gmra.mxu0 %v599
        %v1043 = vpop.f32.mrf.mxu0
        %v1044 = vadd.f32 0.0, %v1043
        %v1045 = vpop.f32.mrf.mxu0
        %v1046 = vadd.f32 0.0, %v1045
        %1047 = vmatprep.mubr.f32.mxu0 %v604
        %1048 = vmatmul.mubr.f32.gmra.mxu0 %v603
        %v1049 = vpop.f32.mrf.mxu0
        %v1050 = vadd.f32 0.0, %v1049
        %v1051 = vpop.f32.mrf.mxu0
        %v1052 = vadd.f32 0.0, %v1051
        %1053 = vmatprep.mubr.f32.mxu0 %v608
        %1054 = vmatmul.mubr.f32.gmra.mxu0 %v607
        %v1055 = vpop.f32.mrf.mxu0
        %v1056 = vadd.f32 0.0, %v1055
        %v1057 = vpop.f32.mrf.mxu0
        %v1058 = vadd.f32 0.0, %v1057
        %1059 = vdwg.mxu0
        %1060 = vmatprep.subr.mxu0 %v753
        %1061 = vmatpush1.msra.mxu0 %v752
        %1062 = vmatprep.subr.mxu0 %v750
        %1063 = vmatpush1.msra.mxu0 %v749
        %1064 = vmatprep.subr.mxu0 %v747
        %1065 = vmatpush1.msra.mxu0 %v746
        %1066 = vmatprep.subr.mxu0 %v744
        %1067 = vmatpush1.msra.mxu0 %v743
        %1068 = vmatprep.subr.mxu0 %v741
        %1069 = vmatpush1.msra.mxu0 %v740
        %1070 = vmatprep.subr.mxu0 %v738
        %1071 = vmatpush1.msra.mxu0 %v737
        %1072 = vmatprep.subr.mxu0 %v735
        %1073 = vmatpush1.msra.mxu0 %v734
        %1074 = vmatprep.subr.mxu0 %v732
        %1075 = vmatpush1.msra.mxu0 %v731
        %1076 = vmatprep.subr.mxu0 %v729
        %1077 = vmatpush1.msra.mxu0 %v728
        %1078 = vmatprep.subr.mxu0 %v726
        %1079 = vmatpush1.msra.mxu0 %v725
        %1080 = vmatprep.subr.mxu0 %v723
        %1081 = vmatpush1.msra.mxu0 %v722
        %1082 = vmatprep.subr.mxu0 %v720
        %1083 = vmatpush1.msra.mxu0 %v719
        %1084 = vmatprep.subr.mxu0 %v717
        %1085 = vmatpush1.msra.mxu0 %v716
        %1086 = vmatprep.subr.mxu0 %v714
        %1087 = vmatpush1.msra.mxu0 %v713
        %1088 = vmatprep.subr.mxu0 %v711
        %1089 = vmatpush1.msra.mxu0 %v710
        %1090 = vmatprep.subr.mxu0 %v708
        %1091 = vmatpush1.msra.mxu0 %v707
        %1092 = vmatprep.subr.mxu0 %v801
        %1093 = vmatpush2.msra.mxu0 %v800
        %1094 = vmatprep.subr.mxu0 %v798
        %1095 = vmatpush2.msra.mxu0 %v797
        %1096 = vmatprep.subr.mxu0 %v795
        %1097 = vmatpush2.msra.mxu0 %v794
        %1098 = vmatprep.subr.mxu0 %v792
        %1099 = vmatpush2.msra.mxu0 %v791
        %1100 = vmatprep.subr.mxu0 %v789
        %1101 = vmatpush2.msra.mxu0 %v788
        %1102 = vmatprep.subr.mxu0 %v786
        %1103 = vmatpush2.msra.mxu0 %v785
        %1104 = vmatprep.subr.mxu0 %v783
        %1105 = vmatpush2.msra.mxu0 %v782
        %1106 = vmatprep.subr.mxu0 %v780
        %1107 = vmatpush2.msra.mxu0 %v779
        %1108 = vmatprep.subr.mxu0 %v777
        %1109 = vmatpush2.msra.mxu0 %v776
        %1110 = vmatprep.subr.mxu0 %v774
        %1111 = vmatpush2.msra.mxu0 %v773
        %1112 = vmatprep.subr.mxu0 %v771
        %1113 = vmatpush2.msra.mxu0 %v770
        %1114 = vmatprep.subr.mxu0 %v768
        %1115 = vmatpush2.msra.mxu0 %v767
        %1116 = vmatprep.subr.mxu0 %v765
        %1117 = vmatpush2.msra.mxu0 %v764
        %1118 = vmatprep.subr.mxu0 %v762
        %1119 = vmatpush2.msra.mxu0 %v761
        %1120 = vmatprep.subr.mxu0 %v759
        %1121 = vmatpush2.msra.mxu0 %v758
        %1122 = vmatprep.subr.mxu0 %v756
        %1123 = vmatpush2.msra.mxu0 %v755
        %1124 = vmatprep.mubr.f32.mxu0 %v486
        %1125 = vmatmul.mubr.f32.gmra.mxu0 %v485
        %v1126 = vpop.f32.mrf.mxu0
        %v1127 = vadd.f32 %v870, %v1126
        %v1128 = vpop.f32.mrf.mxu0
        %v1129 = vadd.f32 %v872, %v1128
        %1130 = vmatprep.mubr.f32.mxu0 %v490
        %1131 = vmatmul.mubr.f32.gmra.mxu0 %v489
        %v1132 = vpop.f32.mrf.mxu0
        %v1133 = vadd.f32 %v876, %v1132
        %v1134 = vpop.f32.mrf.mxu0
        %v1135 = vadd.f32 %v878, %v1134
        %1136 = vmatprep.mubr.f32.mxu0 %v494
        %1137 = vmatmul.mubr.f32.gmra.mxu0 %v493
        %v1138 = vpop.f32.mrf.mxu0
        %v1139 = vadd.f32 %v882, %v1138
        %v1140 = vpop.f32.mrf.mxu0
        %v1141 = vadd.f32 %v884, %v1140
        %1142 = vmatprep.mubr.f32.mxu0 %v498
        %1143 = vmatmul.mubr.f32.gmra.mxu0 %v497
        %v1144 = vpop.f32.mrf.mxu0
        %v1145 = vadd.f32 %v888, %v1144
        %v1146 = vpop.f32.mrf.mxu0
        %v1147 = vadd.f32 %v890, %v1146
        %1148 = vmatprep.mubr.f32.mxu0 %v502
        %1149 = vmatmul.mubr.f32.gmra.mxu0 %v501
        %v1150 = vpop.f32.mrf.mxu0
        %v1151 = vadd.f32 %v894, %v1150
        %v1152 = vpop.f32.mrf.mxu0
        %v1153 = vadd.f32 %v896, %v1152
        %1154 = vmatprep.mubr.f32.mxu0 %v506
        %1155 = vmatmul.mubr.f32.gmra.mxu0 %v505
        %v1156 = vpop.f32.mrf.mxu0
        %v1157 = vadd.f32 %v900, %v1156
        %v1158 = vpop.f32.mrf.mxu0
        %v1159 = vadd.f32 %v902, %v1158
        %1160 = vmatprep.mubr.f32.mxu0 %v510
        %1161 = vmatmul.mubr.f32.gmra.mxu0 %v509
        %v1162 = vpop.f32.mrf.mxu0
        %v1163 = vadd.f32 %v906, %v1162
        %v1164 = vpop.f32.mrf.mxu0
        %v1165 = vadd.f32 %v908, %v1164
        %1166 = vmatprep.mubr.f32.mxu0 %v514
        %1167 = vmatmul.mubr.f32.gmra.mxu0 %v513
        %v1168 = vpop.f32.mrf.mxu0
        %v1169 = vadd.f32 %v912, %v1168
        %v1170 = vpop.f32.mrf.mxu0
        %v1171 = vadd.f32 %v914, %v1170
        %1172 = vmatprep.mubr.f32.mxu0 %v518
        %1173 = vmatmul.mubr.f32.gmra.mxu0 %v517
        %v1174 = vpop.f32.mrf.mxu0
        %v1175 = vadd.f32 %v918, %v1174
        %v1176 = vpop.f32.mrf.mxu0
        %v1177 = vadd.f32 %v920, %v1176
        %1178 = vmatprep.mubr.f32.mxu0 %v522
        %1179 = vmatmul.mubr.f32.gmra.mxu0 %v521
        %v1180 = vpop.f32.mrf.mxu0
        %v1181 = vadd.f32 %v924, %v1180
        %v1182 = vpop.f32.mrf.mxu0
        %v1183 = vadd.f32 %v926, %v1182
        %1184 = vmatprep.mubr.f32.mxu0 %v526
        %1185 = vmatmul.mubr.f32.gmra.mxu0 %v525
        %v1186 = vpop.f32.mrf.mxu0
        %v1187 = vadd.f32 %v930, %v1186
        %v1188 = vpop.f32.mrf.mxu0
        %v1189 = vadd.f32 %v932, %v1188
        %1190 = vmatprep.mubr.f32.mxu0 %v530
        %1191 = vmatmul.mubr.f32.gmra.mxu0 %v529
        %v1192 = vpop.f32.mrf.mxu0
        %v1193 = vadd.f32 %v936, %v1192
        %v1194 = vpop.f32.mrf.mxu0
        %v1195 = vadd.f32 %v938, %v1194
        %1196 = vmatprep.mubr.f32.mxu0 %v534
        %1197 = vmatmul.mubr.f32.gmra.mxu0 %v533
        %v1198 = vpop.f32.mrf.mxu0
        %v1199 = vadd.f32 %v942, %v1198
        %v1200 = vpop.f32.mrf.mxu0
        %v1201 = vadd.f32 %v944, %v1200
        %1202 = vmatprep.mubr.f32.mxu0 %v538
        %1203 = vmatmul.mubr.f32.gmra.mxu0 %v537
        %v1204 = vpop.f32.mrf.mxu0
        %v1205 = vadd.f32 %v948, %v1204
        %v1206 = vpop.f32.mrf.mxu0
        %v1207 = vadd.f32 %v950, %v1206
        %1208 = vmatprep.mubr.f32.mxu0 %v542
        %1209 = vmatmul.mubr.f32.gmra.mxu0 %v541
        %v1210 = vpop.f32.mrf.mxu0
        %v1211 = vadd.f32 %v954, %v1210
        %v1212 = vpop.f32.mrf.mxu0
        %v1213 = vadd.f32 %v956, %v1212
        %1214 = vmatprep.mubr.f32.mxu0 %v546
        %1215 = vmatmul.mubr.f32.gmra.mxu0 %v545
        %v1216 = vpop.f32.mrf.mxu0
        %v1217 = vadd.f32 %v960, %v1216
        %v1218 = vpop.f32.mrf.mxu0
        %v1219 = vadd.f32 %v962, %v1218
        %1220 = vmatprep.mubr.f32.mxu0 %v550
        %1221 = vmatmul.mubr.f32.gmra.mxu0 %v549
        %v1222 = vpop.f32.mrf.mxu0
        %v1223 = vadd.f32 %v966, %v1222
        %v1224 = vpop.f32.mrf.mxu0
        %v1225 = vadd.f32 %v968, %v1224
        %1226 = vmatprep.mubr.f32.mxu0 %v554
        %1227 = vmatmul.mubr.f32.gmra.mxu0 %v553
        %v1228 = vpop.f32.mrf.mxu0
        %v1229 = vadd.f32 %v972, %v1228
        %v1230 = vpop.f32.mrf.mxu0
        %v1231 = vadd.f32 %v974, %v1230
        %1232 = vmatprep.mubr.f32.mxu0 %v558
        %1233 = vmatmul.mubr.f32.gmra.mxu0 %v557
        %v1234 = vpop.f32.mrf.mxu0
        %v1235 = vadd.f32 %v978, %v1234
        %v1236 = vpop.f32.mrf.mxu0
        %v1237 = vadd.f32 %v980, %v1236
        %1238 = vmatprep.mubr.f32.mxu0 %v562
        %1239 = vmatmul.mubr.f32.gmra.mxu0 %v561
        %v1240 = vpop.f32.mrf.mxu0
        %v1241 = vadd.f32 %v984, %v1240
        %v1242 = vpop.f32.mrf.mxu0
        %v1243 = vadd.f32 %v986, %v1242
        %1244 = vmatprep.mubr.f32.mxu0 %v566
        %1245 = vmatmul.mubr.f32.gmra.mxu0 %v565
        %v1246 = vpop.f32.mrf.mxu0
        %v1247 = vadd.f32 %v990, %v1246
        %v1248 = vpop.f32.mrf.mxu0
        %v1249 = vadd.f32 %v992, %v1248
        %1250 = vmatprep.mubr.f32.mxu0 %v570
        %1251 = vmatmul.mubr.f32.gmra.mxu0 %v569
        %v1252 = vpop.f32.mrf.mxu0
        %v1253 = vadd.f32 %v996, %v1252
        %v1254 = vpop.f32.mrf.mxu0
        %v1255 = vadd.f32 %v998, %v1254
        %1256 = vmatprep.mubr.f32.mxu0 %v574
        %1257 = vmatmul.mubr.f32.gmra.mxu0 %v573
        %v1258 = vpop.f32.mrf.mxu0
        %v1259 = vadd.f32 %v1002, %v1258
        %v1260 = vpop.f32.mrf.mxu0
        %v1261 = vadd.f32 %v1004, %v1260
        %1262 = vmatprep.mubr.f32.mxu0 %v578
        %1263 = vmatmul.mubr.f32.gmra.mxu0 %v577
        %v1264 = vpop.f32.mrf.mxu0
        %v1265 = vadd.f32 %v1008, %v1264
        %v1266 = vpop.f32.mrf.mxu0
        %v1267 = vadd.f32 %v1010, %v1266
        %1268 = vmatprep.mubr.f32.mxu0 %v582
        %1269 = vmatmul.mubr.f32.gmra.mxu0 %v581
        %v1270 = vpop.f32.mrf.mxu0
        %v1271 = vadd.f32 %v1014, %v1270
        %v1272 = vpop.f32.mrf.mxu0
        %v1273 = vadd.f32 %v1016, %v1272
        %1274 = vmatprep.mubr.f32.mxu0 %v586
        %1275 = vmatmul.mubr.f32.gmra.mxu0 %v585
        %v1276 = vpop.f32.mrf.mxu0
        %v1277 = vadd.f32 %v1020, %v1276
        %v1278 = vpop.f32.mrf.mxu0
        %v1279 = vadd.f32 %v1022, %v1278
        %1280 = vmatprep.mubr.f32.mxu0 %v590
        %1281 = vmatmul.mubr.f32.gmra.mxu0 %v589
        %v1282 = vpop.f32.mrf.mxu0
        %v1283 = vadd.f32 %v1026, %v1282
        %v1284 = vpop.f32.mrf.mxu0
        %v1285 = vadd.f32 %v1028, %v1284
        %1286 = vmatprep.mubr.f32.mxu0 %v594
        %1287 = vmatmul.mubr.f32.gmra.mxu0 %v593
        %v1288 = vpop.f32.mrf.mxu0
        %v1289 = vadd.f32 %v1032, %v1288
        %v1290 = vpop.f32.mrf.mxu0
        %v1291 = vadd.f32 %v1034, %v1290
        %1292 = vmatprep.mubr.f32.mxu0 %v598
        %1293 = vmatmul.mubr.f32.gmra.mxu0 %v597
        %v1294 = vpop.f32.mrf.mxu0
        %v1295 = vadd.f32 %v1038, %v1294
        %v1296 = vpop.f32.mrf.mxu0
        %v1297 = vadd.f32 %v1040, %v1296
        %1298 = vmatprep.mubr.f32.mxu0 %v602
        %1299 = vmatmul.mubr.f32.gmra.mxu0 %v601
        %v1300 = vpop.f32.mrf.mxu0
        %v1301 = vadd.f32 %v1044, %v1300
        %v1302 = vpop.f32.mrf.mxu0
        %v1303 = vadd.f32 %v1046, %v1302
        %1304 = vmatprep.mubr.f32.mxu0 %v606
        %1305 = vmatmul.mubr.f32.gmra.mxu0 %v605
        %v1306 = vpop.f32.mrf.mxu0
        %v1307 = vadd.f32 %v1050, %v1306
        %v1308 = vpop.f32.mrf.mxu0
        %v1309 = vadd.f32 %v1052, %v1308
        %1310 = vmatprep.mubr.f32.mxu0 %v610
        %1311 = vmatmul.mubr.f32.gmra.mxu0 %v609
        %v1312 = vpop.f32.mrf.mxu0
        %v1313 = vadd.f32 %v1056, %v1312
        %v1314 = vpop.f32.mrf.mxu0
        %v1315 = vadd.f32 %v1058, %v1314
        %1316 = vdwg.mxu0
        %1317 = vmatprep.subr.mxu0 0.0
        %1318 = vmatpush1.msra.mxu0 %v658
        %1319 = vmatprep.subr.mxu0 0.0
        %1320 = vmatpush1.msra.mxu0 %v655
        %1321 = vmatprep.subr.mxu0 0.0
        %1322 = vmatpush1.msra.mxu0 %v652
        %1323 = vmatprep.subr.mxu0 0.0
        %1324 = vmatpush1.msra.mxu0 %v649
        %1325 = vmatprep.subr.mxu0 0.0
        %1326 = vmatpush1.msra.mxu0 %v646
        %1327 = vmatprep.subr.mxu0 0.0
        %1328 = vmatpush1.msra.mxu0 %v643
        %1329 = vmatprep.subr.mxu0 0.0
        %1330 = vmatpush1.msra.mxu0 %v640
        %1331 = vmatprep.subr.mxu0 0.0
        %1332 = vmatpush1.msra.mxu0 %v637
        %1333 = vmatprep.subr.mxu0 0.0
        %1334 = vmatpush1.msra.mxu0 %v634
        %1335 = vmatprep.subr.mxu0 0.0
        %1336 = vmatpush1.msra.mxu0 %v631
        %1337 = vmatprep.subr.mxu0 0.0
        %1338 = vmatpush1.msra.mxu0 %v628
        %1339 = vmatprep.subr.mxu0 0.0
        %1340 = vmatpush1.msra.mxu0 %v625
        %1341 = vmatprep.subr.mxu0 0.0
        %1342 = vmatpush1.msra.mxu0 %v622
        %1343 = vmatprep.subr.mxu0 0.0
        %1344 = vmatpush1.msra.mxu0 %v619
        %1345 = vmatprep.subr.mxu0 0.0
        %1346 = vmatpush1.msra.mxu0 %v616
        %1347 = vmatprep.subr.mxu0 0.0
        %1348 = vmatpush1.msra.mxu0 %v613
        %1349 = vmatprep.subr.mxu0 0.0
        %1350 = vmatpush2.msra.mxu0 %v706
        %1351 = vmatprep.subr.mxu0 0.0
        %1352 = vmatpush2.msra.mxu0 %v703
        %1353 = vmatprep.subr.mxu0 0.0
        %1354 = vmatpush2.msra.mxu0 %v700
        %1355 = vmatprep.subr.mxu0 0.0
        %1356 = vmatpush2.msra.mxu0 %v697
        %1357 = vmatprep.subr.mxu0 0.0
        %1358 = vmatpush2.msra.mxu0 %v694
        %1359 = vmatprep.subr.mxu0 0.0
        %1360 = vmatpush2.msra.mxu0 %v691
        %1361 = vmatprep.subr.mxu0 0.0
        %1362 = vmatpush2.msra.mxu0 %v688
        %1363 = vmatprep.subr.mxu0 0.0
        %1364 = vmatpush2.msra.mxu0 %v685
        %1365 = vmatprep.subr.mxu0 0.0
        %1366 = vmatpush2.msra.mxu0 %v682
        %1367 = vmatprep.subr.mxu0 0.0
        %1368 = vmatpush2.msra.mxu0 %v679
        %1369 = vmatprep.subr.mxu0 0.0
        %1370 = vmatpush2.msra.mxu0 %v676
        %1371 = vmatprep.subr.mxu0 0.0
        %1372 = vmatpush2.msra.mxu0 %v673
        %1373 = vmatprep.subr.mxu0 0.0
        %1374 = vmatpush2.msra.mxu0 %v670
        %1375 = vmatprep.subr.mxu0 0.0
        %1376 = vmatpush2.msra.mxu0 %v667
        %1377 = vmatprep.subr.mxu0 0.0
        %1378 = vmatpush2.msra.mxu0 %v664
        %1379 = vmatprep.subr.mxu0 0.0
        %1380 = vmatpush2.msra.mxu0 %v661
        %1381 = vmatprep.mubr.f32.mxu0 %v484
        %1382 = vmatmul.mubr.f32.gmra.mxu0 %v483
        %v1383 = vpop.f32.mrf.mxu0
        %v1384 = vadd.f32 0.0, %v1383
        %v1385 = vpop.f32.mrf.mxu0
        %1386 = vmatprep.mubr.f32.mxu0 %v488
        %1387 = vmatmul.mubr.f32.gmra.mxu0 %v487
        %v1388 = vpop.f32.mrf.mxu0
        %v1389 = vadd.f32 0.0, %v1388
        %v1390 = vpop.f32.mrf.mxu0
        %1391 = vmatprep.mubr.f32.mxu0 %v492
        %1392 = vmatmul.mubr.f32.gmra.mxu0 %v491
        %v1393 = vpop.f32.mrf.mxu0
        %v1394 = vadd.f32 0.0, %v1393
        %v1395 = vpop.f32.mrf.mxu0
        %1396 = vmatprep.mubr.f32.mxu0 %v496
        %1397 = vmatmul.mubr.f32.gmra.mxu0 %v495
        %v1398 = vpop.f32.mrf.mxu0
        %v1399 = vadd.f32 0.0, %v1398
        %v1400 = vpop.f32.mrf.mxu0
        %1401 = vmatprep.mubr.f32.mxu0 %v500
        %1402 = vmatmul.mubr.f32.gmra.mxu0 %v499
        %v1403 = vpop.f32.mrf.mxu0
        %v1404 = vadd.f32 0.0, %v1403
        %v1405 = vpop.f32.mrf.mxu0
        %1406 = vmatprep.mubr.f32.mxu0 %v504
        %1407 = vmatmul.mubr.f32.gmra.mxu0 %v503
        %v1408 = vpop.f32.mrf.mxu0
        %v1409 = vadd.f32 0.0, %v1408
        %v1410 = vpop.f32.mrf.mxu0
        %1411 = vmatprep.mubr.f32.mxu0 %v508
        %1412 = vmatmul.mubr.f32.gmra.mxu0 %v507
        %v1413 = vpop.f32.mrf.mxu0
        %v1414 = vadd.f32 0.0, %v1413
        %v1415 = vpop.f32.mrf.mxu0
        %1416 = vmatprep.mubr.f32.mxu0 %v512
        %1417 = vmatmul.mubr.f32.gmra.mxu0 %v511
        %v1418 = vpop.f32.mrf.mxu0
        %v1419 = vadd.f32 0.0, %v1418
        %v1420 = vpop.f32.mrf.mxu0
        %1421 = vmatprep.mubr.f32.mxu0 %v516
        %1422 = vmatmul.mubr.f32.gmra.mxu0 %v515
        %v1423 = vpop.f32.mrf.mxu0
        %v1424 = vadd.f32 0.0, %v1423
        %v1425 = vpop.f32.mrf.mxu0
        %1426 = vmatprep.mubr.f32.mxu0 %v520
        %1427 = vmatmul.mubr.f32.gmra.mxu0 %v519
        %v1428 = vpop.f32.mrf.mxu0
        %v1429 = vadd.f32 0.0, %v1428
        %v1430 = vpop.f32.mrf.mxu0
        %1431 = vmatprep.mubr.f32.mxu0 %v524
        %1432 = vmatmul.mubr.f32.gmra.mxu0 %v523
        %v1433 = vpop.f32.mrf.mxu0
        %v1434 = vadd.f32 0.0, %v1433
        %v1435 = vpop.f32.mrf.mxu0
        %1436 = vmatprep.mubr.f32.mxu0 %v528
        %1437 = vmatmul.mubr.f32.gmra.mxu0 %v527
        %v1438 = vpop.f32.mrf.mxu0
        %v1439 = vadd.f32 0.0, %v1438
        %v1440 = vpop.f32.mrf.mxu0
        %1441 = vmatprep.mubr.f32.mxu0 %v532
        %1442 = vmatmul.mubr.f32.gmra.mxu0 %v531
        %v1443 = vpop.f32.mrf.mxu0
        %v1444 = vadd.f32 0.0, %v1443
        %v1445 = vpop.f32.mrf.mxu0
        %1446 = vmatprep.mubr.f32.mxu0 %v536
        %1447 = vmatmul.mubr.f32.gmra.mxu0 %v535
        %v1448 = vpop.f32.mrf.mxu0
        %v1449 = vadd.f32 0.0, %v1448
        %v1450 = vpop.f32.mrf.mxu0
        %1451 = vmatprep.mubr.f32.mxu0 %v540
        %1452 = vmatmul.mubr.f32.gmra.mxu0 %v539
        %v1453 = vpop.f32.mrf.mxu0
        %v1454 = vadd.f32 0.0, %v1453
        %v1455 = vpop.f32.mrf.mxu0
        %1456 = vmatprep.mubr.f32.mxu0 %v544
        %1457 = vmatmul.mubr.f32.gmra.mxu0 %v543
        %v1458 = vpop.f32.mrf.mxu0
        %v1459 = vadd.f32 0.0, %v1458
        %v1460 = vpop.f32.mrf.mxu0
        %1461 = vmatprep.mubr.f32.mxu0 %v548
        %1462 = vmatmul.mubr.f32.gmra.mxu0 %v547
        %v1463 = vpop.f32.mrf.mxu0
        %v1464 = vadd.f32 0.0, %v1463
        %v1465 = vpop.f32.mrf.mxu0
        %1466 = vmatprep.mubr.f32.mxu0 %v552
        %1467 = vmatmul.mubr.f32.gmra.mxu0 %v551
        %v1468 = vpop.f32.mrf.mxu0
        %v1469 = vadd.f32 0.0, %v1468
        %v1470 = vpop.f32.mrf.mxu0
        %1471 = vmatprep.mubr.f32.mxu0 %v556
        %1472 = vmatmul.mubr.f32.gmra.mxu0 %v555
        %v1473 = vpop.f32.mrf.mxu0
        %v1474 = vadd.f32 0.0, %v1473
        %v1475 = vpop.f32.mrf.mxu0
        %1476 = vmatprep.mubr.f32.mxu0 %v560
        %1477 = vmatmul.mubr.f32.gmra.mxu0 %v559
        %v1478 = vpop.f32.mrf.mxu0
        %v1479 = vadd.f32 0.0, %v1478
        %v1480 = vpop.f32.mrf.mxu0
        %1481 = vmatprep.mubr.f32.mxu0 %v564
        %1482 = vmatmul.mubr.f32.gmra.mxu0 %v563
        %v1483 = vpop.f32.mrf.mxu0
        %v1484 = vadd.f32 0.0, %v1483
        %v1485 = vpop.f32.mrf.mxu0
        %1486 = vmatprep.mubr.f32.mxu0 %v568
        %1487 = vmatmul.mubr.f32.gmra.mxu0 %v567
        %v1488 = vpop.f32.mrf.mxu0
        %v1489 = vadd.f32 0.0, %v1488
        %v1490 = vpop.f32.mrf.mxu0
        %1491 = vmatprep.mubr.f32.mxu0 %v572
        %1492 = vmatmul.mubr.f32.gmra.mxu0 %v571
        %v1493 = vpop.f32.mrf.mxu0
        %v1494 = vadd.f32 0.0, %v1493
        %v1495 = vpop.f32.mrf.mxu0
        %1496 = vmatprep.mubr.f32.mxu0 %v576
        %1497 = vmatmul.mubr.f32.gmra.mxu0 %v575
        %v1498 = vpop.f32.mrf.mxu0
        %v1499 = vadd.f32 0.0, %v1498
        %v1500 = vpop.f32.mrf.mxu0
        %1501 = vmatprep.mubr.f32.mxu0 %v580
        %1502 = vmatmul.mubr.f32.gmra.mxu0 %v579
        %v1503 = vpop.f32.mrf.mxu0
        %v1504 = vadd.f32 0.0, %v1503
        %v1505 = vpop.f32.mrf.mxu0
        %1506 = vmatprep.mubr.f32.mxu0 %v584
        %1507 = vmatmul.mubr.f32.gmra.mxu0 %v583
        %v1508 = vpop.f32.mrf.mxu0
        %v1509 = vadd.f32 0.0, %v1508
        %v1510 = vpop.f32.mrf.mxu0
        %1511 = vmatprep.mubr.f32.mxu0 %v588
        %1512 = vmatmul.mubr.f32.gmra.mxu0 %v587
        %v1513 = vpop.f32.mrf.mxu0
        %v1514 = vadd.f32 0.0, %v1513
        %v1515 = vpop.f32.mrf.mxu0
        %1516 = vmatprep.mubr.f32.mxu0 %v592
        %1517 = vmatmul.mubr.f32.gmra.mxu0 %v591
        %v1518 = vpop.f32.mrf.mxu0
        %v1519 = vadd.f32 0.0, %v1518
        %v1520 = vpop.f32.mrf.mxu0
        %1521 = vmatprep.mubr.f32.mxu0 %v596
        %1522 = vmatmul.mubr.f32.gmra.mxu0 %v595
        %v1523 = vpop.f32.mrf.mxu0
        %v1524 = vadd.f32 0.0, %v1523
        %v1525 = vpop.f32.mrf.mxu0
        %1526 = vmatprep.mubr.f32.mxu0 %v600
        %1527 = vmatmul.mubr.f32.gmra.mxu0 %v599
        %v1528 = vpop.f32.mrf.mxu0
        %v1529 = vadd.f32 0.0, %v1528
        %v1530 = vpop.f32.mrf.mxu0
        %1531 = vmatprep.mubr.f32.mxu0 %v604
        %1532 = vmatmul.mubr.f32.gmra.mxu0 %v603
        %v1533 = vpop.f32.mrf.mxu0
        %v1534 = vadd.f32 0.0, %v1533
        %v1535 = vpop.f32.mrf.mxu0
        %1536 = vmatprep.mubr.f32.mxu0 %v608
        %1537 = vmatmul.mubr.f32.gmra.mxu0 %v607
        %v1538 = vpop.f32.mrf.mxu0
        %v1539 = vadd.f32 0.0, %v1538
        %v1540 = vpop.f32.mrf.mxu0
        %1541 = vdwg.mxu0
        %1542 = vmatprep.subr.mxu0 0.0
        %1543 = vmatpush1.msra.mxu0 %v754
        %1544 = vmatprep.subr.mxu0 0.0
        %1545 = vmatpush1.msra.mxu0 %v751
        %1546 = vmatprep.subr.mxu0 0.0
        %1547 = vmatpush1.msra.mxu0 %v748
        %1548 = vmatprep.subr.mxu0 0.0
        %1549 = vmatpush1.msra.mxu0 %v745
        %1550 = vmatprep.subr.mxu0 0.0
        %1551 = vmatpush1.msra.mxu0 %v742
        %1552 = vmatprep.subr.mxu0 0.0
        %1553 = vmatpush1.msra.mxu0 %v739
        %1554 = vmatprep.subr.mxu0 0.0
        %1555 = vmatpush1.msra.mxu0 %v736
        %1556 = vmatprep.subr.mxu0 0.0
        %1557 = vmatpush1.msra.mxu0 %v733
        %1558 = vmatprep.subr.mxu0 0.0
        %1559 = vmatpush1.msra.mxu0 %v730
        %1560 = vmatprep.subr.mxu0 0.0
        %1561 = vmatpush1.msra.mxu0 %v727
        %1562 = vmatprep.subr.mxu0 0.0
        %1563 = vmatpush1.msra.mxu0 %v724
        %1564 = vmatprep.subr.mxu0 0.0
        %1565 = vmatpush1.msra.mxu0 %v721
        %1566 = vmatprep.subr.mxu0 0.0
        %1567 = vmatpush1.msra.mxu0 %v718
        %1568 = vmatprep.subr.mxu0 0.0
        %1569 = vmatpush1.msra.mxu0 %v715
        %1570 = vmatprep.subr.mxu0 0.0
        %1571 = vmatpush1.msra.mxu0 %v712
        %1572 = vmatprep.subr.mxu0 0.0
        %1573 = vmatpush1.msra.mxu0 %v709
        %1574 = vmatprep.subr.mxu0 0.0
        %1575 = vmatpush2.msra.mxu0 %v802
        %1576 = vmatprep.subr.mxu0 0.0
        %1577 = vmatpush2.msra.mxu0 %v799
        %1578 = vmatprep.subr.mxu0 0.0
        %1579 = vmatpush2.msra.mxu0 %v796
        %1580 = vmatprep.subr.mxu0 0.0
        %1581 = vmatpush2.msra.mxu0 %v793
        %1582 = vmatprep.subr.mxu0 0.0
        %1583 = vmatpush2.msra.mxu0 %v790
        %1584 = vmatprep.subr.mxu0 0.0
        %1585 = vmatpush2.msra.mxu0 %v787
        %1586 = vmatprep.subr.mxu0 0.0
        %1587 = vmatpush2.msra.mxu0 %v784
        %1588 = vmatprep.subr.mxu0 0.0
        %1589 = vmatpush2.msra.mxu0 %v781
        %1590 = vmatprep.subr.mxu0 0.0
        %1591 = vmatpush2.msra.mxu0 %v778
        %1592 = vmatprep.subr.mxu0 0.0
        %1593 = vmatpush2.msra.mxu0 %v775
        %1594 = vmatprep.subr.mxu0 0.0
        %1595 = vmatpush2.msra.mxu0 %v772
        %1596 = vmatprep.subr.mxu0 0.0
        %1597 = vmatpush2.msra.mxu0 %v769
        %1598 = vmatprep.subr.mxu0 0.0
        %1599 = vmatpush2.msra.mxu0 %v766
        %1600 = vmatprep.subr.mxu0 0.0
        %1601 = vmatpush2.msra.mxu0 %v763
        %1602 = vmatprep.subr.mxu0 0.0
        %1603 = vmatpush2.msra.mxu0 %v760
        %1604 = vmatprep.subr.mxu0 0.0
        %1605 = vmatpush2.msra.mxu0 %v757
        %1606 = vmatprep.mubr.f32.mxu0 %v486
        %1607 = vmatmul.mubr.f32.gmra.mxu0 %v485
        %v1608 = vpop.f32.mrf.mxu0
        %v1609 = vadd.f32 %v1384, %v1608
        %v1610 = vpop.f32.mrf.mxu0
        %1611 = vmatprep.mubr.f32.mxu0 %v490
        %1612 = vmatmul.mubr.f32.gmra.mxu0 %v489
        %v1613 = vpop.f32.mrf.mxu0
        %v1614 = vadd.f32 %v1389, %v1613
        %v1615 = vpop.f32.mrf.mxu0
        %1616 = vmatprep.mubr.f32.mxu0 %v494
        %1617 = vmatmul.mubr.f32.gmra.mxu0 %v493
        %v1618 = vpop.f32.mrf.mxu0
        %v1619 = vadd.f32 %v1394, %v1618
        %v1620 = vpop.f32.mrf.mxu0
        %1621 = vmatprep.mubr.f32.mxu0 %v498
        %1622 = vmatmul.mubr.f32.gmra.mxu0 %v497
        %v1623 = vpop.f32.mrf.mxu0
        %v1624 = vadd.f32 %v1399, %v1623
        %v1625 = vpop.f32.mrf.mxu0
        %1626 = vmatprep.mubr.f32.mxu0 %v502
        %1627 = vmatmul.mubr.f32.gmra.mxu0 %v501
        %v1628 = vpop.f32.mrf.mxu0
        %v1629 = vadd.f32 %v1404, %v1628
        %v1630 = vpop.f32.mrf.mxu0
        %1631 = vmatprep.mubr.f32.mxu0 %v506
        %1632 = vmatmul.mubr.f32.gmra.mxu0 %v505
        %v1633 = vpop.f32.mrf.mxu0
        %v1634 = vadd.f32 %v1409, %v1633
        %v1635 = vpop.f32.mrf.mxu0
        %1636 = vmatprep.mubr.f32.mxu0 %v510
        %1637 = vmatmul.mubr.f32.gmra.mxu0 %v509
        %v1638 = vpop.f32.mrf.mxu0
        %v1639 = vadd.f32 %v1414, %v1638
        %v1640 = vpop.f32.mrf.mxu0
        %1641 = vmatprep.mubr.f32.mxu0 %v514
        %1642 = vmatmul.mubr.f32.gmra.mxu0 %v513
        %v1643 = vpop.f32.mrf.mxu0
        %v1644 = vadd.f32 %v1419, %v1643
        %v1645 = vpop.f32.mrf.mxu0
        %1646 = vmatprep.mubr.f32.mxu0 %v518
        %1647 = vmatmul.mubr.f32.gmra.mxu0 %v517
        %v1648 = vpop.f32.mrf.mxu0
        %v1649 = vadd.f32 %v1424, %v1648
        %v1650 = vpop.f32.mrf.mxu0
        %1651 = vmatprep.mubr.f32.mxu0 %v522
        %1652 = vmatmul.mubr.f32.gmra.mxu0 %v521
        %v1653 = vpop.f32.mrf.mxu0
        %v1654 = vadd.f32 %v1429, %v1653
        %v1655 = vpop.f32.mrf.mxu0
        %1656 = vmatprep.mubr.f32.mxu0 %v526
        %1657 = vmatmul.mubr.f32.gmra.mxu0 %v525
        %v1658 = vpop.f32.mrf.mxu0
        %v1659 = vadd.f32 %v1434, %v1658
        %v1660 = vpop.f32.mrf.mxu0
        %1661 = vmatprep.mubr.f32.mxu0 %v530
        %1662 = vmatmul.mubr.f32.gmra.mxu0 %v529
        %v1663 = vpop.f32.mrf.mxu0
        %v1664 = vadd.f32 %v1439, %v1663
        %v1665 = vpop.f32.mrf.mxu0
        %1666 = vmatprep.mubr.f32.mxu0 %v534
        %1667 = vmatmul.mubr.f32.gmra.mxu0 %v533
        %v1668 = vpop.f32.mrf.mxu0
        %v1669 = vadd.f32 %v1444, %v1668
        %v1670 = vpop.f32.mrf.mxu0
        %1671 = vmatprep.mubr.f32.mxu0 %v538
        %1672 = vmatmul.mubr.f32.gmra.mxu0 %v537
        %v1673 = vpop.f32.mrf.mxu0
        %v1674 = vadd.f32 %v1449, %v1673
        %v1675 = vpop.f32.mrf.mxu0
        %1676 = vmatprep.mubr.f32.mxu0 %v542
        %1677 = vmatmul.mubr.f32.gmra.mxu0 %v541
        %v1678 = vpop.f32.mrf.mxu0
        %v1679 = vadd.f32 %v1454, %v1678
        %v1680 = vpop.f32.mrf.mxu0
        %1681 = vmatprep.mubr.f32.mxu0 %v546
        %1682 = vmatmul.mubr.f32.gmra.mxu0 %v545
        %v1683 = vpop.f32.mrf.mxu0
        %v1684 = vadd.f32 %v1459, %v1683
        %v1685 = vpop.f32.mrf.mxu0
        %1686 = vmatprep.mubr.f32.mxu0 %v550
        %1687 = vmatmul.mubr.f32.gmra.mxu0 %v549
        %v1688 = vpop.f32.mrf.mxu0
        %v1689 = vadd.f32 %v1464, %v1688
        %v1690 = vpop.f32.mrf.mxu0
        %1691 = vmatprep.mubr.f32.mxu0 %v554
        %1692 = vmatmul.mubr.f32.gmra.mxu0 %v553
        %v1693 = vpop.f32.mrf.mxu0
        %v1694 = vadd.f32 %v1469, %v1693
        %v1695 = vpop.f32.mrf.mxu0
        %1696 = vmatprep.mubr.f32.mxu0 %v558
        %1697 = vmatmul.mubr.f32.gmra.mxu0 %v557
        %v1698 = vpop.f32.mrf.mxu0
        %v1699 = vadd.f32 %v1474, %v1698
        %v1700 = vpop.f32.mrf.mxu0
        %1701 = vmatprep.mubr.f32.mxu0 %v562
        %1702 = vmatmul.mubr.f32.gmra.mxu0 %v561
        %v1703 = vpop.f32.mrf.mxu0
        %v1704 = vadd.f32 %v1479, %v1703
        %v1705 = vpop.f32.mrf.mxu0
        %1706 = vmatprep.mubr.f32.mxu0 %v566
        %1707 = vmatmul.mubr.f32.gmra.mxu0 %v565
        %v1708 = vpop.f32.mrf.mxu0
        %v1709 = vadd.f32 %v1484, %v1708
        %v1710 = vpop.f32.mrf.mxu0
        %1711 = vmatprep.mubr.f32.mxu0 %v570
        %1712 = vmatmul.mubr.f32.gmra.mxu0 %v569
        %v1713 = vpop.f32.mrf.mxu0
        %v1714 = vadd.f32 %v1489, %v1713
        %v1715 = vpop.f32.mrf.mxu0
        %1716 = vmatprep.mubr.f32.mxu0 %v574
        %1717 = vmatmul.mubr.f32.gmra.mxu0 %v573
        %v1718 = vpop.f32.mrf.mxu0
        %v1719 = vadd.f32 %v1494, %v1718
        %v1720 = vpop.f32.mrf.mxu0
        %1721 = vmatprep.mubr.f32.mxu0 %v578
        %1722 = vmatmul.mubr.f32.gmra.mxu0 %v577
        %v1723 = vpop.f32.mrf.mxu0
        %v1724 = vadd.f32 %v1499, %v1723
        %v1725 = vpop.f32.mrf.mxu0
        %1726 = vmatprep.mubr.f32.mxu0 %v582
        %1727 = vmatmul.mubr.f32.gmra.mxu0 %v581
        %v1728 = vpop.f32.mrf.mxu0
        %v1729 = vadd.f32 %v1504, %v1728
        %v1730 = vpop.f32.mrf.mxu0
        %1731 = vmatprep.mubr.f32.mxu0 %v586
        %1732 = vmatmul.mubr.f32.gmra.mxu0 %v585
        %v1733 = vpop.f32.mrf.mxu0
        %v1734 = vadd.f32 %v1509, %v1733
        %v1735 = vpop.f32.mrf.mxu0
        %1736 = vmatprep.mubr.f32.mxu0 %v590
        %1737 = vmatmul.mubr.f32.gmra.mxu0 %v589
        %v1738 = vpop.f32.mrf.mxu0
        %v1739 = vadd.f32 %v1514, %v1738
        %v1740 = vpop.f32.mrf.mxu0
        %1741 = vmatprep.mubr.f32.mxu0 %v594
        %1742 = vmatmul.mubr.f32.gmra.mxu0 %v593
        %v1743 = vpop.f32.mrf.mxu0
        %v1744 = vadd.f32 %v1519, %v1743
        %v1745 = vpop.f32.mrf.mxu0
        %1746 = vmatprep.mubr.f32.mxu0 %v598
        %1747 = vmatmul.mubr.f32.gmra.mxu0 %v597
        %v1748 = vpop.f32.mrf.mxu0
        %v1749 = vadd.f32 %v1524, %v1748
        %v1750 = vpop.f32.mrf.mxu0
        %1751 = vmatprep.mubr.f32.mxu0 %v602
        %1752 = vmatmul.mubr.f32.gmra.mxu0 %v601
        %v1753 = vpop.f32.mrf.mxu0
        %v1754 = vadd.f32 %v1529, %v1753
        %v1755 = vpop.f32.mrf.mxu0
        %1756 = vmatprep.mubr.f32.mxu0 %v606
        %1757 = vmatmul.mubr.f32.gmra.mxu0 %v605
        %v1758 = vpop.f32.mrf.mxu0
        %v1759 = vadd.f32 %v1534, %v1758
        %v1760 = vpop.f32.mrf.mxu0
        %1761 = vmatprep.mubr.f32.mxu0 %v610
        %1762 = vmatmul.mubr.f32.gmra.mxu0 %v609
        %v1763 = vpop.f32.mrf.mxu0
        %v1764 = vadd.f32 %v1539, %v1763
        %v1765 = vpop.f32.mrf.mxu0
        %1766 = vdwg.mxu0
        %v1767 = vadd.f32 %v387, %v1127
        %v1768 = vadd.f32 %v388, %v1129
        %v1769 = vadd.f32 %v389, %v1609
        %v1770 = vadd.f32 %v390, %v1133
        %v1771 = vadd.f32 %v391, %v1135
        %v1772 = vadd.f32 %v392, %v1614
        %v1773 = vadd.f32 %v393, %v1139
        %v1774 = vadd.f32 %v394, %v1141
        %v1775 = vadd.f32 %v395, %v1619
        %v1776 = vadd.f32 %v396, %v1145
        %v1777 = vadd.f32 %v397, %v1147
        %v1778 = vadd.f32 %v398, %v1624
        %v1779 = vadd.f32 %v399, %v1151
        %v1780 = vadd.f32 %v400, %v1153
        %v1781 = vadd.f32 %v401, %v1629
        %v1782 = vadd.f32 %v402, %v1157
        %v1783 = vadd.f32 %v403, %v1159
        %v1784 = vadd.f32 %v404, %v1634
        %v1785 = vadd.f32 %v405, %v1163
        %v1786 = vadd.f32 %v406, %v1165
        %v1787 = vadd.f32 %v407, %v1639
        %v1788 = vadd.f32 %v408, %v1169
        %v1789 = vadd.f32 %v409, %v1171
        %v1790 = vadd.f32 %v410, %v1644
        %v1791 = vadd.f32 %v411, %v1175
        %v1792 = vadd.f32 %v412, %v1177
        %v1793 = vadd.f32 %v413, %v1649
        %v1794 = vadd.f32 %v414, %v1181
        %v1795 = vadd.f32 %v415, %v1183
        %v1796 = vadd.f32 %v416, %v1654
        %v1797 = vadd.f32 %v417, %v1187
        %v1798 = vadd.f32 %v418, %v1189
        %v1799 = vadd.f32 %v419, %v1659
        %v1800 = vadd.f32 %v420, %v1193
        %v1801 = vadd.f32 %v421, %v1195
        %v1802 = vadd.f32 %v422, %v1664
        %v1803 = vadd.f32 %v423, %v1199
        %v1804 = vadd.f32 %v424, %v1201
        %v1805 = vadd.f32 %v425, %v1669
        %v1806 = vadd.f32 %v426, %v1205
        %v1807 = vadd.f32 %v427, %v1207
        %v1808 = vadd.f32 %v428, %v1674
        %v1809 = vadd.f32 %v429, %v1211
        %v1810 = vadd.f32 %v430, %v1213
        %v1811 = vadd.f32 %v431, %v1679
        %v1812 = vadd.f32 %v432, %v1217
        %v1813 = vadd.f32 %v433, %v1219
        %v1814 = vadd.f32 %v434, %v1684
        %v1815 = vadd.f32 %v435, %v1223
        %v1816 = vadd.f32 %v436, %v1225
        %v1817 = vadd.f32 %v437, %v1689
        %v1818 = vadd.f32 %v438, %v1229
        %v1819 = vadd.f32 %v439, %v1231
        %v1820 = vadd.f32 %v440, %v1694
        %v1821 = vadd.f32 %v441, %v1235
        %v1822 = vadd.f32 %v442, %v1237
        %v1823 = vadd.f32 %v443, %v1699
        %v1824 = vadd.f32 %v444, %v1241
        %v1825 = vadd.f32 %v445, %v1243
        %v1826 = vadd.f32 %v446, %v1704
        %v1827 = vadd.f32 %v447, %v1247
        %v1828 = vadd.f32 %v448, %v1249
        %v1829 = vadd.f32 %v449, %v1709
        %v1830 = vadd.f32 %v450, %v1253
        %v1831 = vadd.f32 %v451, %v1255
        %v1832 = vadd.f32 %v452, %v1714
        %v1833 = vadd.f32 %v453, %v1259
        %v1834 = vadd.f32 %v454, %v1261
        %v1835 = vadd.f32 %v455, %v1719
        %v1836 = vadd.f32 %v456, %v1265
        %v1837 = vadd.f32 %v457, %v1267
        %v1838 = vadd.f32 %v458, %v1724
        %v1839 = vadd.f32 %v459, %v1271
        %v1840 = vadd.f32 %v460, %v1273
        %v1841 = vadd.f32 %v461, %v1729
        %v1842 = vadd.f32 %v462, %v1277
        %v1843 = vadd.f32 %v463, %v1279
        %v1844 = vadd.f32 %v464, %v1734
        %v1845 = vadd.f32 %v465, %v1283
        %v1846 = vadd.f32 %v466, %v1285
        %v1847 = vadd.f32 %v467, %v1739
        %v1848 = vadd.f32 %v468, %v1289
        %v1849 = vadd.f32 %v469, %v1291
        %v1850 = vadd.f32 %v470, %v1744
        %v1851 = vadd.f32 %v471, %v1295
        %v1852 = vadd.f32 %v472, %v1297
        %v1853 = vadd.f32 %v473, %v1749
        %v1854 = vadd.f32 %v474, %v1301
        %v1855 = vadd.f32 %v475, %v1303
        %v1856 = vadd.f32 %v476, %v1754
        %v1857 = vadd.f32 %v477, %v1307
        %v1858 = vadd.f32 %v478, %v1309
        %v1859 = vadd.f32 %v479, %v1759
        %v1860 = vadd.f32 %v480, %v1313
        %v1861 = vadd.f32 %v481, %v1315
        %v1862 = vadd.f32 %v482, %v1764
        %1863 = vst [vmem:[%s279] sm:$0xff] %v1767
        %1864 = vst [vmem:[%s279 + $0x8] sm:$0xff] %v1768
        %1865 = vst [vmem:[%s279 + $0x10] sm:$0xff] %v1769
        %1866 = vst [vmem:[%s279 + $0x18] sm:$0xff] %v1770
        %1867 = vst [vmem:[%s279 + $0x20] sm:$0xff] %v1771
        %1868 = vst [vmem:[%s279 + $0x28] sm:$0xff] %v1772
        %1869 = vst [vmem:[%s279 + $0x30] sm:$0xff] %v1773
        %1870 = vst [vmem:[%s279 + $0x38] sm:$0xff] %v1774
        %1871 = vst [vmem:[%s279 + $0x40] sm:$0xff] %v1775
        %1872 = vst [vmem:[%s279 + $0x48] sm:$0xff] %v1776
        %1873 = vst [vmem:[%s279 + $0x50] sm:$0xff] %v1777
        %1874 = vst [vmem:[%s279 + $0x58] sm:$0xff] %v1778
        %1875 = vst [vmem:[%s279 + $0x60] sm:$0xff] %v1779
        %1876 = vst [vmem:[%s279 + $0x68] sm:$0xff] %v1780
        %1877 = vst [vmem:[%s279 + $0x70] sm:$0xff] %v1781
        %1878 = vst [vmem:[%s279 + $0x78] sm:$0xff] %v1782
        %1879 = vst [vmem:[%s279 + $0x80] sm:$0xff] %v1783
        %1880 = vst [vmem:[%s279 + $0x88] sm:$0xff] %v1784
        %1881 = vst [vmem:[%s279 + $0x90] sm:$0xff] %v1785
        %1882 = vst [vmem:[%s279 + $0x98] sm:$0xff] %v1786
        %1883 = vst [vmem:[%s279 + $0xa0] sm:$0xff] %v1787
        %1884 = vst [vmem:[%s279 + $0xa8] sm:$0xff] %v1788
        %1885 = vst [vmem:[%s279 + $0xb0] sm:$0xff] %v1789
        %1886 = vst [vmem:[%s279 + $0xb8] sm:$0xff] %v1790
        %1887 = vst [vmem:[%s279 + $0xc0] sm:$0xff] %v1791
        %1888 = vst [vmem:[%s279 + $0xc8] sm:$0xff] %v1792
        %1889 = vst [vmem:[%s279 + $0xd0] sm:$0xff] %v1793
        %1890 = vst [vmem:[%s279 + $0xd8] sm:$0xff] %v1794
        %1891 = vst [vmem:[%s279 + $0xe0] sm:$0xff] %v1795
        %1892 = vst [vmem:[%s279 + $0xe8] sm:$0xff] %v1796
        %1893 = vst [vmem:[%s279 + $0xf0] sm:$0xff] %v1797
        %1894 = vst [vmem:[%s279 + $0xf8] sm:$0xff] %v1798
        %1895 = vst [vmem:[%s279 + $0x100] sm:$0xff] %v1799
        %1896 = vst [vmem:[%s279 + $0x108] sm:$0xff] %v1800
        %1897 = vst [vmem:[%s279 + $0x110] sm:$0xff] %v1801
        %1898 = vst [vmem:[%s279 + $0x118] sm:$0xff] %v1802
        %1899 = vst [vmem:[%s279 + $0x120] sm:$0xff] %v1803
        %1900 = vst [vmem:[%s279 + $0x128] sm:$0xff] %v1804
        %1901 = vst [vmem:[%s279 + $0x130] sm:$0xff] %v1805
        %1902 = vst [vmem:[%s279 + $0x138] sm:$0xff] %v1806
        %1903 = vst [vmem:[%s279 + $0x140] sm:$0xff] %v1807
        %1904 = vst [vmem:[%s279 + $0x148] sm:$0xff] %v1808
        %1905 = vst [vmem:[%s279 + $0x150] sm:$0xff] %v1809
        %1906 = vst [vmem:[%s279 + $0x158] sm:$0xff] %v1810
        %1907 = vst [vmem:[%s279 + $0x160] sm:$0xff] %v1811
        %1908 = vst [vmem:[%s279 + $0x168] sm:$0xff] %v1812
        %1909 = vst [vmem:[%s279 + $0x170] sm:$0xff] %v1813
        %1910 = vst [vmem:[%s279 + $0x178] sm:$0xff] %v1814
        %1911 = vst [vmem:[%s279 + $0x180] sm:$0xff] %v1815
        %1912 = vst [vmem:[%s279 + $0x188] sm:$0xff] %v1816
        %1913 = vst [vmem:[%s279 + $0x190] sm:$0xff] %v1817
        %1914 = vst [vmem:[%s279 + $0x198] sm:$0xff] %v1818
        %1915 = vst [vmem:[%s279 + $0x1a0] sm:$0xff] %v1819
        %1916 = vst [vmem:[%s279 + $0x1a8] sm:$0xff] %v1820
        %1917 = vst [vmem:[%s279 + $0x1b0] sm:$0xff] %v1821
        %1918 = vst [vmem:[%s279 + $0x1b8] sm:$0xff] %v1822
        %1919 = vst [vmem:[%s279 + $0x1c0] sm:$0xff] %v1823
        %1920 = vst [vmem:[%s279 + $0x1c8] sm:$0xff] %v1824
        %1921 = vst [vmem:[%s279 + $0x1d0] sm:$0xff] %v1825
        %1922 = vst [vmem:[%s279 + $0x1d8] sm:$0xff] %v1826
        %1923 = vst [vmem:[%s279 + $0x1e0] sm:$0xff] %v1827
        %1924 = vst [vmem:[%s279 + $0x1e8] sm:$0xff] %v1828
        %1925 = vst [vmem:[%s279 + $0x1f0] sm:$0xff] %v1829
        %1926 = vst [vmem:[%s279 + $0x1f8] sm:$0xff] %v1830
        %1927 = vst [vmem:[%s279 + $0x200] sm:$0xff] %v1831
        %1928 = vst [vmem:[%s279 + $0x208] sm:$0xff] %v1832
        %1929 = vst [vmem:[%s279 + $0x210] sm:$0xff] %v1833
        %1930 = vst [vmem:[%s279 + $0x218] sm:$0xff] %v1834
        %1931 = vst [vmem:[%s279 + $0x220] sm:$0xff] %v1835
        %1932 = vst [vmem:[%s279 + $0x228] sm:$0xff] %v1836
        %1933 = vst [vmem:[%s279 + $0x230] sm:$0xff] %v1837
        %1934 = vst [vmem:[%s279 + $0x238] sm:$0xff] %v1838
        %1935 = vst [vmem:[%s279 + $0x240] sm:$0xff] %v1839
        %1936 = vst [vmem:[%s279 + $0x248] sm:$0xff] %v1840
        %1937 = vst [vmem:[%s279 + $0x250] sm:$0xff] %v1841
        %1938 = vst [vmem:[%s279 + $0x258] sm:$0xff] %v1842
        %1939 = vst [vmem:[%s279 + $0x260] sm:$0xff] %v1843
        %1940 = vst [vmem:[%s279 + $0x268] sm:$0xff] %v1844
        %1941 = vst [vmem:[%s279 + $0x270] sm:$0xff] %v1845
        %1942 = vst [vmem:[%s279 + $0x278] sm:$0xff] %v1846
        %1943 = vst [vmem:[%s279 + $0x280] sm:$0xff] %v1847
        %1944 = vst [vmem:[%s279 + $0x288] sm:$0xff] %v1848
        %1945 = vst [vmem:[%s279 + $0x290] sm:$0xff] %v1849
        %1946 = vst [vmem:[%s279 + $0x298] sm:$0xff] %v1850
        %1947 = vst [vmem:[%s279 + $0x2a0] sm:$0xff] %v1851
        %1948 = vst [vmem:[%s279 + $0x2a8] sm:$0xff] %v1852
        %1949 = vst [vmem:[%s279 + $0x2b0] sm:$0xff] %v1853
        %1950 = vst [vmem:[%s279 + $0x2b8] sm:$0xff] %v1854
        %1951 = vst [vmem:[%s279 + $0x2c0] sm:$0xff] %v1855
        %1952 = vst [vmem:[%s279 + $0x2c8] sm:$0xff] %v1856
        %1953 = vst [vmem:[%s279 + $0x2d0] sm:$0xff] %v1857
        %1954 = vst [vmem:[%s279 + $0x2d8] sm:$0xff] %v1858
        %1955 = vst [vmem:[%s279 + $0x2e0] sm:$0xff] %v1859
        %1956 = vst [vmem:[%s279 + $0x2e8] sm:$0xff] %v1860
        %1957 = vst [vmem:[%s279 + $0x2f0] sm:$0xff] %v1861
        %1958 = vst [vmem:[%s279 + $0x2f8] sm:$0xff] %v1862
        %p1959 = scmp.eq.s32.totalorder %s30, 3
        // Predicated region
        $region49: #{tpu_custom_call.1} parent=31 // pred_check
          %p1960 = pneg %p1959
        $region50: #{tpu_custom_call.1} parent=31 // pred_check_branch
          %1962 = sbr.rel (%p1960) target = $region52
        $region51: #{tpu_custom_call.1} parent=31 // pred_region
          %v1963 = vld [vmem:[%s279] sm:$0xff]
          %v1964 = vld [vmem:[%s279 + $0x8] sm:$0xff]
          %v1965 = vld [vmem:[%s279 + $0x10] sm:$0xff]
          %v1966 = vld [vmem:[%s279 + $0x18] sm:$0xff]
          %v1967 = vld [vmem:[%s279 + $0x20] sm:$0xff]
          %v1968 = vld [vmem:[%s279 + $0x28] sm:$0xff]
          %v1969 = vld [vmem:[%s279 + $0x30] sm:$0xff]
          %v1970 = vld [vmem:[%s279 + $0x38] sm:$0xff]
          %v1971 = vld [vmem:[%s279 + $0x40] sm:$0xff]
          %v1972 = vld [vmem:[%s279 + $0x48] sm:$0xff]
          %v1973 = vld [vmem:[%s279 + $0x50] sm:$0xff]
          %v1974 = vld [vmem:[%s279 + $0x58] sm:$0xff]
          %v1975 = vld [vmem:[%s279 + $0x60] sm:$0xff]
          %v1976 = vld [vmem:[%s279 + $0x68] sm:$0xff]
          %v1977 = vld [vmem:[%s279 + $0x70] sm:$0xff]
          %v1978 = vld [vmem:[%s279 + $0x78] sm:$0xff]
          %v1979 = vld [vmem:[%s279 + $0x80] sm:$0xff]
          %v1980 = vld [vmem:[%s279 + $0x88] sm:$0xff]
          %v1981 = vld [vmem:[%s279 + $0x90] sm:$0xff]
          %v1982 = vld [vmem:[%s279 + $0x98] sm:$0xff]
          %v1983 = vld [vmem:[%s279 + $0xa0] sm:$0xff]
          %v1984 = vld [vmem:[%s279 + $0xa8] sm:$0xff]
          %v1985 = vld [vmem:[%s279 + $0xb0] sm:$0xff]
          %v1986 = vld [vmem:[%s279 + $0xb8] sm:$0xff]
          %v1987 = vld [vmem:[%s279 + $0xc0] sm:$0xff]
          %v1988 = vld [vmem:[%s279 + $0xc8] sm:$0xff]
          %v1989 = vld [vmem:[%s279 + $0xd0] sm:$0xff]
          %v1990 = vld [vmem:[%s279 + $0xd8] sm:$0xff]
          %v1991 = vld [vmem:[%s279 + $0xe0] sm:$0xff]
          %v1992 = vld [vmem:[%s279 + $0xe8] sm:$0xff]
          %v1993 = vld [vmem:[%s279 + $0xf0] sm:$0xff]
          %v1994 = vld [vmem:[%s279 + $0xf8] sm:$0xff]
          %v1995 = vld [vmem:[%s279 + $0x100] sm:$0xff]
          %v1996 = vld [vmem:[%s279 + $0x108] sm:$0xff]
          %v1997 = vld [vmem:[%s279 + $0x110] sm:$0xff]
          %v1998 = vld [vmem:[%s279 + $0x118] sm:$0xff]
          %v1999 = vld [vmem:[%s279 + $0x120] sm:$0xff]
          %v2000 = vld [vmem:[%s279 + $0x128] sm:$0xff]
          %v2001 = vld [vmem:[%s279 + $0x130] sm:$0xff]
          %v2002 = vld [vmem:[%s279 + $0x138] sm:$0xff]
          %v2003 = vld [vmem:[%s279 + $0x140] sm:$0xff]
          %v2004 = vld [vmem:[%s279 + $0x148] sm:$0xff]
          %v2005 = vld [vmem:[%s279 + $0x150] sm:$0xff]
          %v2006 = vld [vmem:[%s279 + $0x158] sm:$0xff]
          %v2007 = vld [vmem:[%s279 + $0x160] sm:$0xff]
          %v2008 = vld [vmem:[%s279 + $0x168] sm:$0xff]
          %v2009 = vld [vmem:[%s279 + $0x170] sm:$0xff]
          %v2010 = vld [vmem:[%s279 + $0x178] sm:$0xff]
          %v2011 = vld [vmem:[%s279 + $0x180] sm:$0xff]
          %v2012 = vld [vmem:[%s279 + $0x188] sm:$0xff]
          %v2013 = vld [vmem:[%s279 + $0x190] sm:$0xff]
          %v2014 = vld [vmem:[%s279 + $0x198] sm:$0xff]
          %v2015 = vld [vmem:[%s279 + $0x1a0] sm:$0xff]
          %v2016 = vld [vmem:[%s279 + $0x1a8] sm:$0xff]
          %v2017 = vld [vmem:[%s279 + $0x1b0] sm:$0xff]
          %v2018 = vld [vmem:[%s279 + $0x1b8] sm:$0xff]
          %v2019 = vld [vmem:[%s279 + $0x1c0] sm:$0xff]
          %v2020 = vld [vmem:[%s279 + $0x1c8] sm:$0xff]
          %v2021 = vld [vmem:[%s279 + $0x1d0] sm:$0xff]
          %v2022 = vld [vmem:[%s279 + $0x1d8] sm:$0xff]
          %v2023 = vld [vmem:[%s279 + $0x1e0] sm:$0xff]
          %v2024 = vld [vmem:[%s279 + $0x1e8] sm:$0xff]
          %v2025 = vld [vmem:[%s279 + $0x1f0] sm:$0xff]
          %v2026 = vld [vmem:[%s279 + $0x1f8] sm:$0xff]
          %v2027 = vld [vmem:[%s279 + $0x200] sm:$0xff]
          %v2028 = vld [vmem:[%s279 + $0x208] sm:$0xff]
          %v2029 = vld [vmem:[%s279 + $0x210] sm:$0xff]
          %v2030 = vld [vmem:[%s279 + $0x218] sm:$0xff]
          %v2031 = vld [vmem:[%s279 + $0x220] sm:$0xff]
          %v2032 = vld [vmem:[%s279 + $0x228] sm:$0xff]
          %v2033 = vld [vmem:[%s279 + $0x230] sm:$0xff]
          %v2034 = vld [vmem:[%s279 + $0x238] sm:$0xff]
          %v2035 = vld [vmem:[%s279 + $0x240] sm:$0xff]
          %v2036 = vld [vmem:[%s279 + $0x248] sm:$0xff]
          %v2037 = vld [vmem:[%s279 + $0x250] sm:$0xff]
          %v2038 = vld [vmem:[%s279 + $0x258] sm:$0xff]
          %v2039 = vld [vmem:[%s279 + $0x260] sm:$0xff]
          %v2040 = vld [vmem:[%s279 + $0x268] sm:$0xff]
          %v2041 = vld [vmem:[%s279 + $0x270] sm:$0xff]
          %v2042 = vld [vmem:[%s279 + $0x278] sm:$0xff]
          %v2043 = vld [vmem:[%s279 + $0x280] sm:$0xff]
          %v2044 = vld [vmem:[%s279 + $0x288] sm:$0xff]
          %v2045 = vld [vmem:[%s279 + $0x290] sm:$0xff]
          %v2046 = vld [vmem:[%s279 + $0x298] sm:$0xff]
          %v2047 = vld [vmem:[%s279 + $0x2a0] sm:$0xff]
          %v2048 = vld [vmem:[%s279 + $0x2a8] sm:$0xff]
          %v2049 = vld [vmem:[%s279 + $0x2b0] sm:$0xff]
          %v2050 = vld [vmem:[%s279 + $0x2b8] sm:$0xff]
          %v2051 = vld [vmem:[%s279 + $0x2c0] sm:$0xff]
          %v2052 = vld [vmem:[%s279 + $0x2c8] sm:$0xff]
          %v2053 = vld [vmem:[%s279 + $0x2d0] sm:$0xff]
          %v2054 = vld [vmem:[%s279 + $0x2d8] sm:$0xff]
          %v2055 = vld [vmem:[%s279 + $0x2e0] sm:$0xff]
          %v2056 = vld [vmem:[%s279 + $0x2e8] sm:$0xff]
          %v2057 = vld [vmem:[%s279 + $0x2f0] sm:$0xff]
          %v2058 = vld [vmem:[%s279 + $0x2f8] sm:$0xff]
          %v2059 = vld [vmem:[#allocation7] sm:$0x7]
          %v2061 = vlaneseq
          %v2062 = vshrl.u32 %v2061, 7
          %v2063 = vsub.s32 0, %v2062
          %v2064 = vrot.slane %v2059, %v2063
          %v2065 = vlaneseq
          %v2066 = vshrl.u32 %v2065, 7
          %v2067 = vsub.s32 1, %v2066
          %v2068 = vrot.slane %v2059, %v2067
          %v2069 = vlaneseq
          %v2070 = vshrl.u32 %v2069, 7
          %v2071 = vsub.s32 2, %v2070
          %v2072 = vrot.slane %v2059, %v2071
          %v2076 = vadd.f32 %v1963, %v2064
          %v2077 = vadd.f32 %v1964, %v2068
          %v2078 = vadd.f32 %v1965, %v2072
          %v2079 = vadd.f32 %v1966, %v2064
          %v2080 = vadd.f32 %v1967, %v2068
          %v2081 = vadd.f32 %v1968, %v2072
          %v2082 = vadd.f32 %v1969, %v2064
          %v2083 = vadd.f32 %v1970, %v2068
          %v2084 = vadd.f32 %v1971, %v2072
          %v2085 = vadd.f32 %v1972, %v2064
          %v2086 = vadd.f32 %v1973, %v2068
          %v2087 = vadd.f32 %v1974, %v2072
          %v2088 = vadd.f32 %v1975, %v2064
          %v2089 = vadd.f32 %v1976, %v2068
          %v2090 = vadd.f32 %v1977, %v2072
          %v2091 = vadd.f32 %v1978, %v2064
          %v2092 = vadd.f32 %v1979, %v2068
          %v2093 = vadd.f32 %v1980, %v2072
          %v2094 = vadd.f32 %v1981, %v2064
          %v2095 = vadd.f32 %v1982, %v2068
          %v2096 = vadd.f32 %v1983, %v2072
          %v2097 = vadd.f32 %v1984, %v2064
          %v2098 = vadd.f32 %v1985, %v2068
          %v2099 = vadd.f32 %v1986, %v2072
          %v2100 = vadd.f32 %v1987, %v2064
          %v2101 = vadd.f32 %v1988, %v2068
          %v2102 = vadd.f32 %v1989, %v2072
          %v2103 = vadd.f32 %v1990, %v2064
          %v2104 = vadd.f32 %v1991, %v2068
          %v2105 = vadd.f32 %v1992, %v2072
          %v2106 = vadd.f32 %v1993, %v2064
          %v2107 = vadd.f32 %v1994, %v2068
          %v2108 = vadd.f32 %v1995, %v2072
          %v2109 = vadd.f32 %v1996, %v2064
          %v2110 = vadd.f32 %v1997, %v2068
          %v2111 = vadd.f32 %v1998, %v2072
          %v2112 = vadd.f32 %v1999, %v2064
          %v2113 = vadd.f32 %v2000, %v2068
          %v2114 = vadd.f32 %v2001, %v2072
          %v2115 = vadd.f32 %v2002, %v2064
          %v2116 = vadd.f32 %v2003, %v2068
          %v2117 = vadd.f32 %v2004, %v2072
          %v2118 = vadd.f32 %v2005, %v2064
          %v2119 = vadd.f32 %v2006, %v2068
          %v2120 = vadd.f32 %v2007, %v2072
          %v2121 = vadd.f32 %v2008, %v2064
          %v2122 = vadd.f32 %v2009, %v2068
          %v2123 = vadd.f32 %v2010, %v2072
          %v2124 = vadd.f32 %v2011, %v2064
          %v2125 = vadd.f32 %v2012, %v2068
          %v2126 = vadd.f32 %v2013, %v2072
          %v2127 = vadd.f32 %v2014, %v2064
          %v2128 = vadd.f32 %v2015, %v2068
          %v2129 = vadd.f32 %v2016, %v2072
          %v2130 = vadd.f32 %v2017, %v2064
          %v2131 = vadd.f32 %v2018, %v2068
          %v2132 = vadd.f32 %v2019, %v2072
          %v2133 = vadd.f32 %v2020, %v2064
          %v2134 = vadd.f32 %v2021, %v2068
          %v2135 = vadd.f32 %v2022, %v2072
          %v2136 = vadd.f32 %v2023, %v2064
          %v2137 = vadd.f32 %v2024, %v2068
          %v2138 = vadd.f32 %v2025, %v2072
          %v2139 = vadd.f32 %v2026, %v2064
          %v2140 = vadd.f32 %v2027, %v2068
          %v2141 = vadd.f32 %v2028, %v2072
          %v2142 = vadd.f32 %v2029, %v2064
          %v2143 = vadd.f32 %v2030, %v2068
          %v2144 = vadd.f32 %v2031, %v2072
          %v2145 = vadd.f32 %v2032, %v2064
          %v2146 = vadd.f32 %v2033, %v2068
          %v2147 = vadd.f32 %v2034, %v2072
          %v2148 = vadd.f32 %v2035, %v2064
          %v2149 = vadd.f32 %v2036, %v2068
          %v2150 = vadd.f32 %v2037, %v2072
          %v2151 = vadd.f32 %v2038, %v2064
          %v2152 = vadd.f32 %v2039, %v2068
          %v2153 = vadd.f32 %v2040, %v2072
          %v2154 = vadd.f32 %v2041, %v2064
          %v2155 = vadd.f32 %v2042, %v2068
          %v2156 = vadd.f32 %v2043, %v2072
          %v2157 = vadd.f32 %v2044, %v2064
          %v2158 = vadd.f32 %v2045, %v2068
          %v2159 = vadd.f32 %v2046, %v2072
          %v2160 = vadd.f32 %v2047, %v2064
          %v2161 = vadd.f32 %v2048, %v2068
          %v2162 = vadd.f32 %v2049, %v2072
          %v2163 = vadd.f32 %v2050, %v2064
          %v2164 = vadd.f32 %v2051, %v2068
          %v2165 = vadd.f32 %v2052, %v2072
          %v2166 = vadd.f32 %v2053, %v2064
          %v2167 = vadd.f32 %v2054, %v2068
          %v2168 = vadd.f32 %v2055, %v2072
          %v2169 = vadd.f32 %v2056, %v2064
          %v2170 = vadd.f32 %v2057, %v2068
          %v2171 = vadd.f32 %v2058, %v2072
          %2172 = vst [vmem:[%s279] sm:$0xff] %v2076
          %2173 = vst [vmem:[%s279 + $0x8] sm:$0xff] %v2077
          %2174 = vst [vmem:[%s279 + $0x10] sm:$0xff] %v2078
          %2175 = vst [vmem:[%s279 + $0x18] sm:$0xff] %v2079
          %2176 = vst [vmem:[%s279 + $0x20] sm:$0xff] %v2080
          %2177 = vst [vmem:[%s279 + $0x28] sm:$0xff] %v2081
          %2178 = vst [vmem:[%s279 + $0x30] sm:$0xff] %v2082
          %2179 = vst [vmem:[%s279 + $0x38] sm:$0xff] %v2083
          %2180 = vst [vmem:[%s279 + $0x40] sm:$0xff] %v2084
          %2181 = vst [vmem:[%s279 + $0x48] sm:$0xff] %v2085
          %2182 = vst [vmem:[%s279 + $0x50] sm:$0xff] %v2086
          %2183 = vst [vmem:[%s279 + $0x58] sm:$0xff] %v2087
          %2184 = vst [vmem:[%s279 + $0x60] sm:$0xff] %v2088
          %2185 = vst [vmem:[%s279 + $0x68] sm:$0xff] %v2089
          %2186 = vst [vmem:[%s279 + $0x70] sm:$0xff] %v2090
          %2187 = vst [vmem:[%s279 + $0x78] sm:$0xff] %v2091
          %2188 = vst [vmem:[%s279 + $0x80] sm:$0xff] %v2092
          %2189 = vst [vmem:[%s279 + $0x88] sm:$0xff] %v2093
          %2190 = vst [vmem:[%s279 + $0x90] sm:$0xff] %v2094
          %2191 = vst [vmem:[%s279 + $0x98] sm:$0xff] %v2095
          %2192 = vst [vmem:[%s279 + $0xa0] sm:$0xff] %v2096
          %2193 = vst [vmem:[%s279 + $0xa8] sm:$0xff] %v2097
          %2194 = vst [vmem:[%s279 + $0xb0] sm:$0xff] %v2098
          %2195 = vst [vmem:[%s279 + $0xb8] sm:$0xff] %v2099
          %2196 = vst [vmem:[%s279 + $0xc0] sm:$0xff] %v2100
          %2197 = vst [vmem:[%s279 + $0xc8] sm:$0xff] %v2101
          %2198 = vst [vmem:[%s279 + $0xd0] sm:$0xff] %v2102
          %2199 = vst [vmem:[%s279 + $0xd8] sm:$0xff] %v2103
          %2200 = vst [vmem:[%s279 + $0xe0] sm:$0xff] %v2104
          %2201 = vst [vmem:[%s279 + $0xe8] sm:$0xff] %v2105
          %2202 = vst [vmem:[%s279 + $0xf0] sm:$0xff] %v2106
          %2203 = vst [vmem:[%s279 + $0xf8] sm:$0xff] %v2107
          %2204 = vst [vmem:[%s279 + $0x100] sm:$0xff] %v2108
          %2205 = vst [vmem:[%s279 + $0x108] sm:$0xff] %v2109
          %2206 = vst [vmem:[%s279 + $0x110] sm:$0xff] %v2110
          %2207 = vst [vmem:[%s279 + $0x118] sm:$0xff] %v2111
          %2208 = vst [vmem:[%s279 + $0x120] sm:$0xff] %v2112
          %2209 = vst [vmem:[%s279 + $0x128] sm:$0xff] %v2113
          %2210 = vst [vmem:[%s279 + $0x130] sm:$0xff] %v2114
          %2211 = vst [vmem:[%s279 + $0x138] sm:$0xff] %v2115
          %2212 = vst [vmem:[%s279 + $0x140] sm:$0xff] %v2116
          %2213 = vst [vmem:[%s279 + $0x148] sm:$0xff] %v2117
          %2214 = vst [vmem:[%s279 + $0x150] sm:$0xff] %v2118
          %2215 = vst [vmem:[%s279 + $0x158] sm:$0xff] %v2119
          %2216 = vst [vmem:[%s279 + $0x160] sm:$0xff] %v2120
          %2217 = vst [vmem:[%s279 + $0x168] sm:$0xff] %v2121
          %2218 = vst [vmem:[%s279 + $0x170] sm:$0xff] %v2122
          %2219 = vst [vmem:[%s279 + $0x178] sm:$0xff] %v2123
          %2220 = vst [vmem:[%s279 + $0x180] sm:$0xff] %v2124
          %2221 = vst [vmem:[%s279 + $0x188] sm:$0xff] %v2125
          %2222 = vst [vmem:[%s279 + $0x190] sm:$0xff] %v2126
          %2223 = vst [vmem:[%s279 + $0x198] sm:$0xff] %v2127
          %2224 = vst [vmem:[%s279 + $0x1a0] sm:$0xff] %v2128
          %2225 = vst [vmem:[%s279 + $0x1a8] sm:$0xff] %v2129
          %2226 = vst [vmem:[%s279 + $0x1b0] sm:$0xff] %v2130
          %2227 = vst [vmem:[%s279 + $0x1b8] sm:$0xff] %v2131
          %2228 = vst [vmem:[%s279 + $0x1c0] sm:$0xff] %v2132
          %2229 = vst [vmem:[%s279 + $0x1c8] sm:$0xff] %v2133
          %2230 = vst [vmem:[%s279 + $0x1d0] sm:$0xff] %v2134
          %2231 = vst [vmem:[%s279 + $0x1d8] sm:$0xff] %v2135
          %2232 = vst [vmem:[%s279 + $0x1e0] sm:$0xff] %v2136
          %2233 = vst [vmem:[%s279 + $0x1e8] sm:$0xff] %v2137
          %2234 = vst [vmem:[%s279 + $0x1f0] sm:$0xff] %v2138
          %2235 = vst [vmem:[%s279 + $0x1f8] sm:$0xff] %v2139
          %2236 = vst [vmem:[%s279 + $0x200] sm:$0xff] %v2140
          %2237 = vst [vmem:[%s279 + $0x208] sm:$0xff] %v2141
          %2238 = vst [vmem:[%s279 + $0x210] sm:$0xff] %v2142
          %2239 = vst [vmem:[%s279 + $0x218] sm:$0xff] %v2143
          %2240 = vst [vmem:[%s279 + $0x220] sm:$0xff] %v2144
          %2241 = vst [vmem:[%s279 + $0x228] sm:$0xff] %v2145
          %2242 = vst [vmem:[%s279 + $0x230] sm:$0xff] %v2146
          %2243 = vst [vmem:[%s279 + $0x238] sm:$0xff] %v2147
          %2244 = vst [vmem:[%s279 + $0x240] sm:$0xff] %v2148
          %2245 = vst [vmem:[%s279 + $0x248] sm:$0xff] %v2149
          %2246 = vst [vmem:[%s279 + $0x250] sm:$0xff] %v2150
          %2247 = vst [vmem:[%s279 + $0x258] sm:$0xff] %v2151
          %2248 = vst [vmem:[%s279 + $0x260] sm:$0xff] %v2152
          %2249 = vst [vmem:[%s279 + $0x268] sm:$0xff] %v2153
          %2250 = vst [vmem:[%s279 + $0x270] sm:$0xff] %v2154
          %2251 = vst [vmem:[%s279 + $0x278] sm:$0xff] %v2155
          %2252 = vst [vmem:[%s279 + $0x280] sm:$0xff] %v2156
          %2253 = vst [vmem:[%s279 + $0x288] sm:$0xff] %v2157
          %2254 = vst [vmem:[%s279 + $0x290] sm:$0xff] %v2158
          %2255 = vst [vmem:[%s279 + $0x298] sm:$0xff] %v2159
          %2256 = vst [vmem:[%s279 + $0x2a0] sm:$0xff] %v2160
          %2257 = vst [vmem:[%s279 + $0x2a8] sm:$0xff] %v2161
          %2258 = vst [vmem:[%s279 + $0x2b0] sm:$0xff] %v2162
          %2259 = vst [vmem:[%s279 + $0x2b8] sm:$0xff] %v2163
          %2260 = vst [vmem:[%s279 + $0x2c0] sm:$0xff] %v2164
          %2261 = vst [vmem:[%s279 + $0x2c8] sm:$0xff] %v2165
          %2262 = vst [vmem:[%s279 + $0x2d0] sm:$0xff] %v2166
          %2263 = vst [vmem:[%s279 + $0x2d8] sm:$0xff] %v2167
          %2264 = vst [vmem:[%s279 + $0x2e0] sm:$0xff] %v2168
          %2265 = vst [vmem:[%s279 + $0x2e8] sm:$0xff] %v2169
          %2266 = vst [vmem:[%s279 + $0x2f0] sm:$0xff] %v2170
          %2267 = vst [vmem:[%s279 + $0x2f8] sm:$0xff] %v2171
        $region52: #{tpu_custom_call.1} parent=31 // pred_fallthru
          _
        %s2268 = sand.u32 %s134, 1
        %s2269 = scalar_lea.sflag [#allocation4], %s2268
        %s2270 = sand.u32 %s134, 1
        %s2271 = smul.addr %s2270, 768
        %s2272 = scalar_lea.vmem [#allocation8], %s2271
        // Predicated region
        $region53: #{tpu_custom_call.1} parent=31 // pred_check
          %p2273 = pneg %p144
        $region54: #{tpu_custom_call.1} parent=31 // pred_check_branch
          %2275 = sbr.rel (%p2273) target = $region56
        $region55: #{tpu_custom_call.1} parent=31 // pred_region
          %s2276 = smul.u32 32, %s28
          %s2277 = smul.u32 3, %s29
          %s2279 = ssub.s32 12288, 12288
          %2280 = vsyncadd %s2269, %s2279
          %s2281 = smul.addr %s2276, 3
          %s2282 = sadd.s32 %s2277, %s2281
          %s2283 = smul.addr %s2282, 128
          %s2284 = scalar_lea.hbm %s3, %s2283
          %s2285 = sshll.u32 %s2272, 4
          %s2286 = int_to_ptr.vmem [resolvable:$true] %s2285
          %2291 = dma.vmem_to_hbm [thread:$0]  %s2286, 12288, %s2284, %s2269, 384, 384, 24
        $region56: #{tpu_custom_call.1} parent=31 // pred_fallthru
          _
      $region32: #{tpu_custom_call.1} parent=5 // pred_fallthru
        _
      %p2292 = scmp.le.s32.totalorder 2, %s18
      // Predicated region
      $region57: #{tpu_custom_call.1} parent=5 // pred_check
        %p2293 = pneg %p2292
      $region58: #{tpu_custom_call.1} parent=5 // pred_check_branch
        %2295 = sbr.rel (%p2293) target = $region60
      $region59: #{tpu_custom_call.1} parent=5 // pred_region
        %s2296 = ssub.s32 %s18, 2
        // Predicated region
        $region61: #{tpu_custom_call.1} parent=59 // pred_check
          %p2297 = pneg %p150
        $region62: #{tpu_custom_call.1} parent=59 // pred_check_branch
          %2299 = sbr.rel (%p2297) target = $region64
        $region63: #{tpu_custom_call.1} parent=59 // pred_region
          %s2300 = sand.u32 %s135, 1
          %s2301 = scalar_lea.sflag [#allocation4], %s2300
          %s2302 = sand.u32 %s135, 1
          %s2303 = smul.addr %s2302, 768
          %s2304 = scalar_lea.vmem [#allocation8], %s2303
          %2305 = dma.done %s2301, 12288
        $region64: #{tpu_custom_call.1} parent=59 // pred_fallthru
          _
      $region60: #{tpu_custom_call.1} parent=5 // pred_fallthru
        _
    $region6: #{tpu_custom_call.1} parent=1 // loop_footer
      %s22 = sadd.s32 1, %s18
    $region7: #{tpu_custom_call.1} parent=1 // loop_footer_branch
      %17 = sbr.rel target = $region3
    $region8: #{tpu_custom_call.1} parent=1 // loop_exit
      _
    %2306 = vsyncpa [#allocation3], 1
    %s2307 = scalar_lea.sflag [#allocation3], 1
    %2308 = vsyncpa %s2307, 1
    %2309 = vsyncpa [#allocation6], 1
    %s2310 = scalar_lea.sflag [#allocation6], 1
    %2311 = vsyncpa %s2310, 1
    %2312 = vsyncpa [#allocation4], 1
    %s2313 = scalar_lea.sflag [#allocation4], 1
    %2314 = vsyncpa %s2313, 1

</llo_original>
